<compile_context>
chip_gen: v6e
topology: v6e:2x2x1
jax: 0.10.0
libtpu: 0.0.40
codegen_flags: <defaults>
</compile_context>

<pallas_src>
import jax
import jax.numpy as jnp
from jax.experimental import pallas as pl
from jax.experimental.pallas import tpu as pltpu

N_JOINT = 23


def _make_input_encoder(input_ch, condition_code_dim, seq_len, threshold, tile_n=512):
    """Forward fn for InputEncoder with:
         temporal_enc_method='empty', spatial_enc_method='empty', fuse_method='concat',
         spatial_localize_cfg = dict(enable=True, threshold=threshold).
       This config path has no learned parameters."""
    temporal_dim = seq_len * condition_code_dim          # 'empty' temporal encoder
    spatial_dim = N_JOINT * temporal_dim                 # 'empty' spatial encoder
    out_dim = input_ch + spatial_dim                     # 'concat' fuse

    # TODO(synk): threshold==1 branch needs the PART2JOINTS lookup table, which is not
    #             defined in the provided source; only 0<threshold<1 and threshold==-1
    #             branches are implemented here.

    def kernel(w_ref, pe_ref, wmat_ref, out_ref):
        # w_ref:    (TN, 24)        skinning weights (col 0 = background; wmat row 0 == 0)
        # pe_ref:   (TN, input_ch)  positional embedding
        # wmat_ref: (24, out_dim)   gate-scaled, input_ch-shifted block-diagonal codes
        w = w_ref[...]
        if threshold == -1:
            mask = w.astype(jnp.float32)                 # raw-weight branch
        else:
            mask = jnp.where(w > threshold, 1.0, 0.0).astype(jnp.float32)
        # Matmul result already sits at its final lane offset (cols < input_ch are zero),
        # so the full-width store needs no lane rotation / masked partial stores beyond
        # the unavoidable tail of out_dim.
        full = jnp.dot(mask, wmat_ref[...], preferred_element_type=jnp.float32)
        out_ref[...] = full
        out_ref[:, :input_ch] = pe_ref[...]              # overwrite zero prefix with pe

    @jax.jit
    def forward(pos_embed, condition_code, weights, gate_weight):
        # --- glue: reproduce the torch reshape plumbing (condition batch B == 1) ---
        # condition_code: (1, seq_len, N_JOINT, D)
        cc = jnp.transpose(condition_code, (0, 2, 1, 3))        # (1, 23, seq_len, D)
        temporal_code = cc.reshape(N_JOINT, temporal_dim)        # (23, td)
        eye = jnp.eye(N_JOINT, dtype=jnp.float32)
        blockdiag = (eye[:, :, None] * temporal_code[None, :, :]).reshape(
            N_JOINT, spatial_dim)                                # (23, spatial_dim)
        # Scatter matrix with zero background row and zero input_ch-column prefix;
        # gate_weight folded in here (applies to spatial part only -> correct).
        wmat = jnp.zeros((N_JOINT + 1, out_dim), jnp.float32)
        wmat = wmat.at[1:, input_ch:].set(blockdiag * jnp.float32(gate_weight))

        n_rays = pos_embed.shape[0]
        n_pad = pl.cdiv(n_rays, tile_n) * tile_n
        pe = pos_embed.astype(jnp.float32)
        w = weights.astype(jnp.float32)
        if n_pad != n_rays:
            # Padded rows produce zeros and are sliced off below.
            pe = jnp.pad(pe, ((0, n_pad - n_rays), (0, 0)))
            w = jnp.pad(w, ((0, n_pad - n_rays), (0, 0)))

        cost = pl.CostEstimate(
            flops=2 * n_pad * (N_JOINT + 1) * out_dim,
            transcendentals=0,
            bytes_accessed=4 * (n_pad * (N_JOINT + 1)         # weights read
                                + n_pad * input_ch            # pos_embed read
                                + (N_JOINT + 1) * out_dim     # wmat read (once)
                                + n_pad * out_dim))           # output write

        out = pl.pallas_call(
            kernel,
            out_shape=jax.ShapeDtypeStruct((n_pad, out_dim), jnp.float32),
            grid=(n_pad // tile_n,),
            in_specs=[
                pl.BlockSpec((tile_n, N_JOINT + 1), lambda i: (i, 0)),   # weights
                pl.BlockSpec((tile_n, input_ch), lambda i: (i, 0)),      # pos_embed
                pl.BlockSpec((N_JOINT + 1, out_dim), lambda i: (0, 0)),  # wmat (resident)
            ],
            out_specs=pl.BlockSpec((tile_n, out_dim), lambda i: (i, 0)),
            compiler_params=pltpu.CompilerParams(
                dimension_semantics=("parallel",)),
            cost_estimate=cost,
        )(w, pe, wmat)

        return out[:n_rays] if n_pad != n_rays else out

    return forward, out_dim


def _reference(pos_embed, condition_code, weights, gate_weight, threshold,
               seq_len, condition_code_dim):
    """Pure-JAX replica of the torch forward for this config (for verification)."""
    td = seq_len * condition_code_dim
    cc = jnp.transpose(condition_code, (0, 2, 1, 3)).reshape(N_JOINT, td)   # (23, td)
    ws = weights[:, 1:]                                                     # (N, 23)
    if threshold == -1:
        mask = ws
    else:
        mask = jnp.where(ws > threshold, 1.0, 0.0)
    localized = mask[:, :, None] * cc[None, :, :]                           # (N, 23, td)
    spatial = localized.reshape(weights.shape[0], -1)
    return jnp.concatenate([pos_embed, spatial * gate_weight], axis=-1)


if __name__ == "__main__":
    # Shapes consistent with the module; 2048 rays / tile_n=512 -> grid of 4
    # (even and >=4 so both v7x TensorCores get work and the pipeline has depth).
    N_RAYS = 2048
    INPUT_CH = 64        # positional-embedding channels
    SEQ_LEN = 4          # temporal window
    COND_DIM = 8         # condition_code_dim per (joint, time step)
    THRESHOLD = 0.03     # spatial_localize threshold
    GATE = 0.7           # gate_weight forward arg

    key = jax.random.PRNGKey(0)
    k_pe, k_cc, k_w = jax.random.split(key, 3)

    pos_embed = jax.random.normal(k_pe, (N_RAYS, INPUT_CH), jnp.float32)
    condition_code = jax.random.normal(k_cc, (1, SEQ_LEN, N_JOINT, COND_DIM), jnp.float32)
    raw_w = jax.random.uniform(k_w, (N_RAYS, N_JOINT + 1), jnp.float32)
    weights = raw_w / jnp.sum(raw_w, axis=1, keepdims=True)   # skinning-like weights

    forward, out_dim = _make_input_encoder(
        input_ch=INPUT_CH, condition_code_dim=COND_DIM, seq_len=SEQ_LEN,
        threshold=THRESHOLD, tile_n=512)

    out = forward(pos_embed, condition_code, weights, GATE)
    out = jax.block_until_ready(out)

    ref = _reference(pos_embed, condition_code, weights, GATE, THRESHOLD,
                     SEQ_LEN, COND_DIM)
    assert out.shape == (N_RAYS, out_dim), (out.shape, out_dim)
    assert jnp.allclose(out, ref, atol=1e-5, rtol=1e-5), float(jnp.max(jnp.abs(out - ref)))

    print("KERNEL_OK")
</pallas_src>

<mosaic_0001>
module attributes {stable_mosaic.version = 11 : i64} {
  func.func @kernel(%arg0: i32, %arg1: memref<512x24xf32, #tpu.memory_space<vmem>>, %arg2: memref<512x64xf32, #tpu.memory_space<vmem>>, %arg3: memref<24x800xf32, #tpu.memory_space<vmem>>, %arg4: memref<512x800xf32, #tpu.memory_space<vmem>>) attributes {dimension_semantics = [#tpu.dimension_semantics<parallel>], iteration_bounds = array<i64: 4>, scalar_prefetch = 0 : i64, scratch_operands = 0 : i64, tpu.core_type = #tpu.core_type<tc>, window_params = [{transform_indices = @transform_0, window_bounds = array<i64: 512, 24>}, {transform_indices = @transform_1, window_bounds = array<i64: 512, 64>}, {pipeline_mode = #tpu.pipeline_mode<synchronous>, transform_indices = @transform_2, window_bounds = array<i64: 24, 800>}, {transform_indices = @transform_3, window_bounds = array<i64: 512, 800>}]} {
    %c0 = arith.constant 0 : index
    %c0_0 = arith.constant 0 : index
    %0 = vector.load %arg1[%c0, %c0_0] : memref<512x24xf32, #tpu.memory_space<vmem>>, vector<512x24xf32>
    %cst = arith.constant 3.000000e-02 : f32
    %1 = vector.broadcast %cst : f32 to vector<512x24xf32>
    %2 = arith.cmpf ogt, %0, %1 : vector<512x24xf32>
    %cst_1 = arith.constant 1.000000e+00 : f32
    %cst_2 = arith.constant 0.000000e+00 : f32
    %3 = vector.broadcast %cst_1 : f32 to vector<512x24xf32>
    %4 = vector.broadcast %cst_2 : f32 to vector<512x24xf32>
    %5 = arith.select %2, %3, %4 : vector<512x24xi1>, vector<512x24xf32>
    %c0_3 = arith.constant 0 : index
    %c0_4 = arith.constant 0 : index
    %6 = vector.load %arg3[%c0_3, %c0_4] : memref<24x800xf32, #tpu.memory_space<vmem>>, vector<24x800xf32>
    %cst_5 = arith.constant dense<0.000000e+00> : vector<512x800xf32>
    %7 = tpu.matmul %5, %6, %cst_5 {dimension_numbers = #tpu.dot_dimension_numbers<[1], [0], [0], [1], [0, 0, 1, 1], [], []>} : vector<512x24xf32>, vector<24x800xf32>, vector<512x800xf32> -> vector<512x800xf32>
    %c0_6 = arith.constant 0 : index
    %c0_7 = arith.constant 0 : index
    %8 = vector.load %arg4[%c0_6, %c0_7] : memref<512x800xf32, #tpu.memory_space<vmem>>, vector<512x800xf32>
    tpu.vector_store %arg4[%c0_6, %c0_7], %7 {strides = array<i32>} : memref<512x800xf32, #tpu.memory_space<vmem>>, vector<512x800xf32>,
    %c0_8 = arith.constant 0 : index
    %c0_9 = arith.constant 0 : index
    %9 = vector.load %arg2[%c0_8, %c0_9] : memref<512x64xf32, #tpu.memory_space<vmem>>, vector<512x64xf32>
    %c0_10 = arith.constant 0 : index
    %c0_11 = arith.constant 0 : index
    %10 = vector.load %arg4[%c0_10, %c0_11] : memref<512x800xf32, #tpu.memory_space<vmem>>, vector<512x64xf32>
    tpu.vector_store %arg4[%c0_10, %c0_11], %9 {strides = array<i32>} : memref<512x800xf32, #tpu.memory_space<vmem>>, vector<512x64xf32>,
    return
  }
  func.func @transform_0(%arg0: i32) -> (i32, i32) {
    %c0_i32 = arith.constant 0 : i32
    %c0_i32_0 = arith.constant 0 : i32
    return %arg0, %c0_i32 : i32, i32
  }
  func.func @transform_1(%arg0: i32) -> (i32, i32) {
    %c0_i32 = arith.constant 0 : i32
    %c0_i32_0 = arith.constant 0 : i32
    return %arg0, %c0_i32 : i32, i32
  }
  func.func @transform_2(%arg0: i32) -> (i32, i32) {
    %c0_i32 = arith.constant 0 : i32
    %c0_i32_0 = arith.constant 0 : i32
    %c0_i32_1 = arith.constant 0 : i32
    return %c0_i32, %c0_i32_0 : i32, i32
  }
  func.func @transform_3(%arg0: i32) -> (i32, i32) {
    %c0_i32 = arith.constant 0 : i32
    %c0_i32_0 = arith.constant 0 : i32
    return %arg0, %c0_i32 : i32, i32
  }
}

</mosaic_0001>

<llo_original>
// kernel: forward.1
$region0: #{forward.1}
  #allocation0 [shape = 'u32[]', space=smem, size = 0x4, offset = 0x4, fixed_abs, tag = 'smem constant byte address 0x4 - core index']
  #allocation1 [shape = 'u32[144,128]{1,0:T(1,128)}', space=vmem, size = 0x12000, scoped, tag = 'internal scratch']
  %s0 = inlined_call_operand.vmem [shape: f32[2048,24], index: 0, kind: input, shape index: {}]
  %s1 = inlined_call_operand.vmem [shape: f32[2048,64], index: 1, kind: input, shape index: {}]
  %s2 = inlined_call_operand.vmem [shape: f32[24,800], index: 2, kind: input, shape index: {}]
  %s3 = inlined_call_operand.vmem [shape: f32[2048,800], index: 3, kind: output, shape index: {}]
  %s4 = sld [smem:[#allocation0]]
  $region45: #{forward.1} parent=0
    _
  %s6 = ssub.s32 1, %s4
  %s7 = scalar_select 0, %s6, %s4
  loop: start=0, step=1, limit=6
  $region2: #{forward.1} parent=0 // loop_pre_header
    _
  $region3: #{forward.1} parent=0 // loop_header
    %s9 = sphi 0, %s13
    %p10 = scmp.ge.s32.totalorder %s9, 6
    %s19 = sphi 0, %s21
    %s22 = sphi 0, %s19
    %s23 = sphi 0, %s22
    %s39 = sphi 0, %s23
    %s45 = sphi 0, %s47
    %s48 = sphi 0, %s45
    %s49 = sphi 0, %s48
    %s65 = sphi 0, %s49
    %s69 = sphi 0, %s69
    %s71 = sphi 0, %s69
    %s72 = sphi 0, %s71
    %s86 = sphi 0, %s72
    %s92 = sphi 0, %s94
    %s95 = sphi 0, %s92
    %s96 = sphi 0, %s95
    %s112 = sphi 0, %s96
  $region4: #{forward.1} parent=0 // loop_header_branch
    %12 = sbr.rel (%p10) target = $region8
  $region5: #{forward.1} parent=0 // loop_body
    %s14 = ssub.s32 %s9, 1
    %s15 = ssub.s32 %s9, 2
    %s16 = sadd.s32 %s9, 1
    %s17 = ssub.s32 %s9, %s16
    %p18 = scmp.eq.s32.totalorder %s17, 0
    %s20 = sadd.s32 %s19, 1
    %s21 = scalar_select %p18, %s19, %s20
    %p24 = pneg %p18
    %p25 = scmp.eq.s32.totalorder %s9, 3
    %p26 = por %p24, %p25
    %p27 = scmp.ne.s32.totalorder %s19, %s22
    %p28 = scmp.eq.s32.totalorder %s9, 0
    %p29 = por %p27, %p28
    %p30 = scmp.ne.s32.totalorder %s19, %s22
    %p31 = scmp.eq.s32.totalorder %s14, 3
    %p32 = por %p30, %p31
    %p33 = scmp.ne.s32.totalorder %s22, %s23
    %p34 = scmp.eq.s32.totalorder %s14, 0
    %p35 = por %p33, %p34
    %p36 = scmp.ne.s32.totalorder %s22, %s23
    %p37 = scmp.eq.s32.totalorder %s15, 3
    %p38 = por %p36, %p37
    %p40 = scmp.ne.s32.totalorder %s23, %s39
    %p41 = scmp.eq.s32.totalorder %s15, 0
    %p42 = por %p40, %p41
    %s43 = ssub.s32 %s9, %s16
    %p44 = scmp.eq.s32.totalorder %s43, 0
    %s46 = sadd.s32 %s45, 1
    %s47 = scalar_select %p44, %s45, %s46
    %p50 = pneg %p44
    %p51 = scmp.eq.s32.totalorder %s9, 3
    %p52 = por %p50, %p51
    %p53 = scmp.ne.s32.totalorder %s45, %s48
    %p54 = scmp.eq.s32.totalorder %s9, 0
    %p55 = por %p53, %p54
    %p56 = scmp.ne.s32.totalorder %s45, %s48
    %p57 = scmp.eq.s32.totalorder %s14, 3
    %p58 = por %p56, %p57
    %p59 = scmp.ne.s32.totalorder %s48, %s49
    %p60 = scmp.eq.s32.totalorder %s14, 0
    %p61 = por %p59, %p60
    %p62 = scmp.ne.s32.totalorder %s48, %s49
    %p63 = scmp.eq.s32.totalorder %s15, 3
    %p64 = por %p62, %p63
    %p66 = scmp.ne.s32.totalorder %s49, %s65
    %p67 = scmp.eq.s32.totalorder %s15, 0
    %p68 = por %p66, %p67
    %s70 = sadd.s32 %s69, 1
    %p73 = scmp.eq.s32.totalorder %s9, 3
    %p74 = scmp.ne.s32.totalorder %s69, %s71
    %p75 = scmp.eq.s32.totalorder %s9, 0
    %p76 = por %p74, %p75
    %p77 = scmp.ne.s32.totalorder %s69, %s71
    %p78 = scmp.eq.s32.totalorder %s14, 3
    %p79 = por %p77, %p78
    %p80 = scmp.ne.s32.totalorder %s71, %s72
    %p81 = scmp.eq.s32.totalorder %s14, 0
    %p82 = por %p80, %p81
    %p83 = scmp.ne.s32.totalorder %s71, %s72
    %p84 = scmp.eq.s32.totalorder %s15, 3
    %p85 = por %p83, %p84
    %p87 = scmp.ne.s32.totalorder %s72, %s86
    %p88 = scmp.eq.s32.totalorder %s15, 0
    %p89 = por %p87, %p88
    %s90 = ssub.s32 %s9, %s16
    %p91 = scmp.eq.s32.totalorder %s90, 0
    %s93 = sadd.s32 %s92, 1
    %s94 = scalar_select %p91, %s92, %s93
    %p97 = pneg %p91
    %p98 = scmp.eq.s32.totalorder %s9, 3
    %p99 = por %p97, %p98
    %p100 = scmp.ne.s32.totalorder %s92, %s95
    %p101 = scmp.eq.s32.totalorder %s9, 0
    %p102 = por %p100, %p101
    %p103 = scmp.ne.s32.totalorder %s92, %s95
    %p104 = scmp.eq.s32.totalorder %s14, 3
    %p105 = por %p103, %p104
    %p106 = scmp.ne.s32.totalorder %s95, %s96
    %p107 = scmp.eq.s32.totalorder %s14, 0
    %p108 = por %p106, %p107
    %p109 = scmp.ne.s32.totalorder %s95, %s96
    %p110 = scmp.eq.s32.totalorder %s15, 3
    %p111 = por %p109, %p110
    %p113 = scmp.ne.s32.totalorder %s96, %s112
    %p114 = scmp.eq.s32.totalorder %s15, 0
    %p115 = por %p113, %p114
    %p116 = scmp.le.s32.totalorder 1, %s9
    %p117 = scmp.lt.s32.totalorder %s9, 5
    %p118 = pnand %p116, %p117
    %p119 = pneg %p118
    // Predicated region
    $region9: #{forward.1} parent=5 // pred_check
      _
    $region10: #{forward.1} parent=5 // pred_check_branch
      %121 = sbr.rel (%p118) target = $region12
    $region11: #{forward.1} parent=5 // pred_region
      %s122 = ssub.s32 %s9, 1
      // Predicated region
      $region13: #{forward.1} parent=11 // pred_check
        %p123 = pneg %p82
      $region14: #{forward.1} parent=11 // pred_check_branch
        %125 = sbr.rel (%p123) target = $region16
      $region15: #{forward.1} parent=11 // pred_region
        _
      $region16: #{forward.1} parent=11 // pred_fallthru
        _
    $region12: #{forward.1} parent=5 // pred_fallthru
      _
    %p126 = scmp.lt.s32.totalorder %s9, 4
    // Predicated region
    $region17: #{forward.1} parent=5 // pred_check
      %p127 = pneg %p126
    $region18: #{forward.1} parent=5 // pred_check_branch
      %129 = sbr.rel (%p127) target = $region20
    $region19: #{forward.1} parent=5 // pred_region
      // Predicated region
      $region21: #{forward.1} parent=19 // pred_check
        %p130 = pneg %p29
      $region22: #{forward.1} parent=19 // pred_check_branch
        %132 = sbr.rel (%p130) target = $region24
      $region23: #{forward.1} parent=19 // pred_region
        %s133 = smul.u32 64, %s9
        %p134 = scmp.lt.s32.totalorder %s133, 255
        %s135 = scalar_select %p134, %s133, 255
        %s136 = smul.addr %s135, 8
        %s137 = scalar_lea.vmem %s0, %s136
        %s138 = smul.u32 64, %s9
      $region24: #{forward.1} parent=19 // pred_fallthru
        _
      // Predicated region
      $region25: #{forward.1} parent=19 // pred_check
        %p139 = pneg %p55
      $region26: #{forward.1} parent=19 // pred_check_branch
        %141 = sbr.rel (%p139) target = $region28
      $region27: #{forward.1} parent=19 // pred_region
        %s142 = smul.u32 64, %s9
        %p143 = scmp.lt.s32.totalorder %s142, 255
        %s144 = scalar_select %p143, %s142, 255
        %s145 = smul.addr %s144, 8
        %s146 = scalar_lea.vmem %s1, %s145
        %s147 = smul.u32 64, %s9
      $region28: #{forward.1} parent=19 // pred_fallthru
        _
    $region20: #{forward.1} parent=5 // pred_fallthru
      _
    %p148 = scmp.le.s32.totalorder 1, %s9
    %p149 = scmp.lt.s32.totalorder %s9, 5
    %p150 = pnand %p148, %p149
    %p151 = pneg %p150
    // Predicated region
    $region29: #{forward.1} parent=5 // pred_check
      _
    $region30: #{forward.1} parent=5 // pred_check_branch
      %153 = sbr.rel (%p150) target = $region32
    $region31: #{forward.1} parent=5 // pred_region
      %s154 = ssub.s32 %s9, 1
      %s155 = smul.u32 64, %s14
      %p156 = scmp.lt.s32.totalorder %s155, 255
      %s157 = scalar_select %p156, %s155, 255
      %s158 = smul.addr %s157, 8
      %s159 = scalar_lea.vmem %s0, %s158
      %p160 = pneg %p35
      %p161 = pneg %p32
      %s162 = smul.u32 64, %s14
      %p163 = scmp.lt.s32.totalorder %s162, 255
      %s164 = scalar_select %p163, %s162, 255
      %s165 = smul.addr %s164, 8
      %s166 = scalar_lea.vmem %s1, %s165
      %p167 = pneg %p61
      %p168 = pneg %p58
      %p169 = pneg %p82
      %p170 = pneg %p79
      %p171 = pneg %p108
      %p172 = pneg %p105
      %s173 = smul.u32 64, %s14
      %p174 = scmp.lt.s32.totalorder %s173, 255
      %s175 = scalar_select %p174, %s173, 255
      %s176 = smul.addr %s175, 7
      %s177 = smul.addr %s176, 8
      %s178 = scalar_lea.vmem %s3, %s177
      %s179 = smul.u32 64, %s14
      %p180 = scmp.lt.s32.totalorder %s179, 255
      %s181 = scalar_select %p180, %s179, 255
      %s182 = smul.addr %s181, 8
      %s183 = scalar_lea.vmem %s0, %s182
      %s184 = smul.u32 64, %s14
      %s185 = smul.u32 64, %s14
      %p186 = scmp.lt.s32.totalorder %s185, 255
      %s187 = scalar_select %p186, %s185, 255
      %s188 = smul.addr %s187, 8
      %s189 = scalar_lea.vmem %s1, %s188
      %s190 = smul.u32 64, %s14
      %s191 = smul.u32 64, %s14
      %p192 = scmp.lt.s32.totalorder %s191, 255
      %s193 = scalar_select %p192, %s191, 255
      %s194 = smul.addr %s193, 7
      %s195 = smul.addr %s194, 8
      %s196 = scalar_lea.vmem %s3, %s195
      %s197 = smul.u32 64, %s14
      %v198 = vld [vmem:[%s183] sm:$0xff]
      %v199 = vld [vmem:[%s183 + $0x8] sm:$0xff]
      %v200 = vld [vmem:[%s183 + $0x10] sm:$0xff]
      %v201 = vld [vmem:[%s183 + $0x18] sm:$0xff]
      %v202 = vld [vmem:[%s183 + $0x20] sm:$0xff]
      %v203 = vld [vmem:[%s183 + $0x28] sm:$0xff]
      %v204 = vld [vmem:[%s183 + $0x30] sm:$0xff]
      %v205 = vld [vmem:[%s183 + $0x38] sm:$0xff]
      %v206 = vld [vmem:[%s183 + $0x40] sm:$0xff]
      %v207 = vld [vmem:[%s183 + $0x48] sm:$0xff]
      %v208 = vld [vmem:[%s183 + $0x50] sm:$0xff]
      %v209 = vld [vmem:[%s183 + $0x58] sm:$0xff]
      %v210 = vld [vmem:[%s183 + $0x60] sm:$0xff]
      %v211 = vld [vmem:[%s183 + $0x68] sm:$0xff]
      %v212 = vld [vmem:[%s183 + $0x70] sm:$0xff]
      %v213 = vld [vmem:[%s183 + $0x78] sm:$0xff]
      %v214 = vld [vmem:[%s183 + $0x80] sm:$0xff]
      %v215 = vld [vmem:[%s183 + $0x88] sm:$0xff]
      %v216 = vld [vmem:[%s183 + $0x90] sm:$0xff]
      %v217 = vld [vmem:[%s183 + $0x98] sm:$0xff]
      %v218 = vld [vmem:[%s183 + $0xa0] sm:$0xff]
      %v219 = vld [vmem:[%s183 + $0xa8] sm:$0xff]
      %v220 = vld [vmem:[%s183 + $0xb0] sm:$0xff]
      %v221 = vld [vmem:[%s183 + $0xb8] sm:$0xff]
      %v222 = vld [vmem:[%s183 + $0xc0] sm:$0xff]
      %v223 = vld [vmem:[%s183 + $0xc8] sm:$0xff]
      %v224 = vld [vmem:[%s183 + $0xd0] sm:$0xff]
      %v225 = vld [vmem:[%s183 + $0xd8] sm:$0xff]
      %v226 = vld [vmem:[%s183 + $0xe0] sm:$0xff]
      %v227 = vld [vmem:[%s183 + $0xe8] sm:$0xff]
      %v228 = vld [vmem:[%s183 + $0xf0] sm:$0xff]
      %v229 = vld [vmem:[%s183 + $0xf8] sm:$0xff]
      %v230 = vld [vmem:[%s183 + $0x100] sm:$0xff]
      %v231 = vld [vmem:[%s183 + $0x108] sm:$0xff]
      %v232 = vld [vmem:[%s183 + $0x110] sm:$0xff]
      %v233 = vld [vmem:[%s183 + $0x118] sm:$0xff]
      %v234 = vld [vmem:[%s183 + $0x120] sm:$0xff]
      %v235 = vld [vmem:[%s183 + $0x128] sm:$0xff]
      %v236 = vld [vmem:[%s183 + $0x130] sm:$0xff]
      %v237 = vld [vmem:[%s183 + $0x138] sm:$0xff]
      %v238 = vld [vmem:[%s183 + $0x140] sm:$0xff]
      %v239 = vld [vmem:[%s183 + $0x148] sm:$0xff]
      %v240 = vld [vmem:[%s183 + $0x150] sm:$0xff]
      %v241 = vld [vmem:[%s183 + $0x158] sm:$0xff]
      %v242 = vld [vmem:[%s183 + $0x160] sm:$0xff]
      %v243 = vld [vmem:[%s183 + $0x168] sm:$0xff]
      %v244 = vld [vmem:[%s183 + $0x170] sm:$0xff]
      %v245 = vld [vmem:[%s183 + $0x178] sm:$0xff]
      %v246 = vld [vmem:[%s183 + $0x180] sm:$0xff]
      %v247 = vld [vmem:[%s183 + $0x188] sm:$0xff]
      %v248 = vld [vmem:[%s183 + $0x190] sm:$0xff]
      %v249 = vld [vmem:[%s183 + $0x198] sm:$0xff]
      %v250 = vld [vmem:[%s183 + $0x1a0] sm:$0xff]
      %v251 = vld [vmem:[%s183 + $0x1a8] sm:$0xff]
      %v252 = vld [vmem:[%s183 + $0x1b0] sm:$0xff]
      %v253 = vld [vmem:[%s183 + $0x1b8] sm:$0xff]
      %v254 = vld [vmem:[%s183 + $0x1c0] sm:$0xff]
      %v255 = vld [vmem:[%s183 + $0x1c8] sm:$0xff]
      %v256 = vld [vmem:[%s183 + $0x1d0] sm:$0xff]
      %v257 = vld [vmem:[%s183 + $0x1d8] sm:$0xff]
      %v258 = vld [vmem:[%s183 + $0x1e0] sm:$0xff]
      %v259 = vld [vmem:[%s183 + $0x1e8] sm:$0xff]
      %v260 = vld [vmem:[%s183 + $0x1f0] sm:$0xff]
      %v261 = vld [vmem:[%s183 + $0x1f8] sm:$0xff]
      %vm262 = vcmp.gt.f32.partialorder %v198, 0.03
      %vm263 = vcmp.gt.f32.partialorder %v199, 0.03
      %vm264 = vcmp.gt.f32.partialorder %v200, 0.03
      %vm265 = vcmp.gt.f32.partialorder %v201, 0.03
      %vm266 = vcmp.gt.f32.partialorder %v202, 0.03
      %vm267 = vcmp.gt.f32.partialorder %v203, 0.03
      %vm268 = vcmp.gt.f32.partialorder %v204, 0.03
      %vm269 = vcmp.gt.f32.partialorder %v205, 0.03
      %vm270 = vcmp.gt.f32.partialorder %v206, 0.03
      %vm271 = vcmp.gt.f32.partialorder %v207, 0.03
      %vm272 = vcmp.gt.f32.partialorder %v208, 0.03
      %vm273 = vcmp.gt.f32.partialorder %v209, 0.03
      %vm274 = vcmp.gt.f32.partialorder %v210, 0.03
      %vm275 = vcmp.gt.f32.partialorder %v211, 0.03
      %vm276 = vcmp.gt.f32.partialorder %v212, 0.03
      %vm277 = vcmp.gt.f32.partialorder %v213, 0.03
      %vm278 = vcmp.gt.f32.partialorder %v214, 0.03
      %vm279 = vcmp.gt.f32.partialorder %v215, 0.03
      %vm280 = vcmp.gt.f32.partialorder %v216, 0.03
      %vm281 = vcmp.gt.f32.partialorder %v217, 0.03
      %vm282 = vcmp.gt.f32.partialorder %v218, 0.03
      %vm283 = vcmp.gt.f32.partialorder %v219, 0.03
      %vm284 = vcmp.gt.f32.partialorder %v220, 0.03
      %vm285 = vcmp.gt.f32.partialorder %v221, 0.03
      %vm286 = vcmp.gt.f32.partialorder %v222, 0.03
      %vm287 = vcmp.gt.f32.partialorder %v223, 0.03
      %vm288 = vcmp.gt.f32.partialorder %v224, 0.03
      %vm289 = vcmp.gt.f32.partialorder %v225, 0.03
      %vm290 = vcmp.gt.f32.partialorder %v226, 0.03
      %vm291 = vcmp.gt.f32.partialorder %v227, 0.03
      %vm292 = vcmp.gt.f32.partialorder %v228, 0.03
      %vm293 = vcmp.gt.f32.partialorder %v229, 0.03
      %vm294 = vcmp.gt.f32.partialorder %v230, 0.03
      %vm295 = vcmp.gt.f32.partialorder %v231, 0.03
      %vm296 = vcmp.gt.f32.partialorder %v232, 0.03
      %vm297 = vcmp.gt.f32.partialorder %v233, 0.03
      %vm298 = vcmp.gt.f32.partialorder %v234, 0.03
      %vm299 = vcmp.gt.f32.partialorder %v235, 0.03
      %vm300 = vcmp.gt.f32.partialorder %v236, 0.03
      %vm301 = vcmp.gt.f32.partialorder %v237, 0.03
      %vm302 = vcmp.gt.f32.partialorder %v238, 0.03
      %vm303 = vcmp.gt.f32.partialorder %v239, 0.03
      %vm304 = vcmp.gt.f32.partialorder %v240, 0.03
      %vm305 = vcmp.gt.f32.partialorder %v241, 0.03
      %vm306 = vcmp.gt.f32.partialorder %v242, 0.03
      %vm307 = vcmp.gt.f32.partialorder %v243, 0.03
      %vm308 = vcmp.gt.f32.partialorder %v244, 0.03
      %vm309 = vcmp.gt.f32.partialorder %v245, 0.03
      %vm310 = vcmp.gt.f32.partialorder %v246, 0.03
      %vm311 = vcmp.gt.f32.partialorder %v247, 0.03
      %vm312 = vcmp.gt.f32.partialorder %v248, 0.03
      %vm313 = vcmp.gt.f32.partialorder %v249, 0.03
      %vm314 = vcmp.gt.f32.partialorder %v250, 0.03
      %vm315 = vcmp.gt.f32.partialorder %v251, 0.03
      %vm316 = vcmp.gt.f32.partialorder %v252, 0.03
      %vm317 = vcmp.gt.f32.partialorder %v253, 0.03
      %vm318 = vcmp.gt.f32.partialorder %v254, 0.03
      %vm319 = vcmp.gt.f32.partialorder %v255, 0.03
      %vm320 = vcmp.gt.f32.partialorder %v256, 0.03
      %vm321 = vcmp.gt.f32.partialorder %v257, 0.03
      %vm322 = vcmp.gt.f32.partialorder %v258, 0.03
      %vm323 = vcmp.gt.f32.partialorder %v259, 0.03
      %vm324 = vcmp.gt.f32.partialorder %v260, 0.03
      %vm325 = vcmp.gt.f32.partialorder %v261, 0.03
      %v326 = vsel %vm262, 1.0, 0.0
      %v327 = vsel %vm263, 1.0, 0.0
      %v328 = vsel %vm264, 1.0, 0.0
      %v329 = vsel %vm265, 1.0, 0.0
      %v330 = vsel %vm266, 1.0, 0.0
      %v331 = vsel %vm267, 1.0, 0.0
      %v332 = vsel %vm268, 1.0, 0.0
      %v333 = vsel %vm269, 1.0, 0.0
      %v334 = vsel %vm270, 1.0, 0.0
      %v335 = vsel %vm271, 1.0, 0.0
      %v336 = vsel %vm272, 1.0, 0.0
      %v337 = vsel %vm273, 1.0, 0.0
      %v338 = vsel %vm274, 1.0, 0.0
      %v339 = vsel %vm275, 1.0, 0.0
      %v340 = vsel %vm276, 1.0, 0.0
      %v341 = vsel %vm277, 1.0, 0.0
      %v342 = vsel %vm278, 1.0, 0.0
      %v343 = vsel %vm279, 1.0, 0.0
      %v344 = vsel %vm280, 1.0, 0.0
      %v345 = vsel %vm281, 1.0, 0.0
      %v346 = vsel %vm282, 1.0, 0.0
      %v347 = vsel %vm283, 1.0, 0.0
      %v348 = vsel %vm284, 1.0, 0.0
      %v349 = vsel %vm285, 1.0, 0.0
      %v350 = vsel %vm286, 1.0, 0.0
      %v351 = vsel %vm287, 1.0, 0.0
      %v352 = vsel %vm288, 1.0, 0.0
      %v353 = vsel %vm289, 1.0, 0.0
      %v354 = vsel %vm290, 1.0, 0.0
      %v355 = vsel %vm291, 1.0, 0.0
      %v356 = vsel %vm292, 1.0, 0.0
      %v357 = vsel %vm293, 1.0, 0.0
      %v358 = vsel %vm294, 1.0, 0.0
      %v359 = vsel %vm295, 1.0, 0.0
      %v360 = vsel %vm296, 1.0, 0.0
      %v361 = vsel %vm297, 1.0, 0.0
      %v362 = vsel %vm298, 1.0, 0.0
      %v363 = vsel %vm299, 1.0, 0.0
      %v364 = vsel %vm300, 1.0, 0.0
      %v365 = vsel %vm301, 1.0, 0.0
      %v366 = vsel %vm302, 1.0, 0.0
      %v367 = vsel %vm303, 1.0, 0.0
      %v368 = vsel %vm304, 1.0, 0.0
      %v369 = vsel %vm305, 1.0, 0.0
      %v370 = vsel %vm306, 1.0, 0.0
      %v371 = vsel %vm307, 1.0, 0.0
      %v372 = vsel %vm308, 1.0, 0.0
      %v373 = vsel %vm309, 1.0, 0.0
      %v374 = vsel %vm310, 1.0, 0.0
      %v375 = vsel %vm311, 1.0, 0.0
      %v376 = vsel %vm312, 1.0, 0.0
      %v377 = vsel %vm313, 1.0, 0.0
      %v378 = vsel %vm314, 1.0, 0.0
      %v379 = vsel %vm315, 1.0, 0.0
      %v380 = vsel %vm316, 1.0, 0.0
      %v381 = vsel %vm317, 1.0, 0.0
      %v382 = vsel %vm318, 1.0, 0.0
      %v383 = vsel %vm319, 1.0, 0.0
      %v384 = vsel %vm320, 1.0, 0.0
      %v385 = vsel %vm321, 1.0, 0.0
      %v386 = vsel %vm322, 1.0, 0.0
      %v387 = vsel %vm323, 1.0, 0.0
      %v388 = vsel %vm324, 1.0, 0.0
      %v389 = vsel %vm325, 1.0, 0.0
      %v390 = vld [vmem:[%s2] sm:$0xff]
      %v391 = vld [vmem:[%s2 + $0x8] sm:$0xff]
      %v392 = vld [vmem:[%s2 + $0x10] sm:$0xff]
      %v393 = vld [vmem:[%s2 + $0x18] sm:$0xff]
      %v394 = vld [vmem:[%s2 + $0x20] sm:$0xff]
      %v395 = vld [vmem:[%s2 + $0x28] sm:$0xff]
      %v396 = vld [vmem:[%s2 + $0x30] sm:$0xff]
      %v397 = vld [vmem:[%s2 + $0x38] sm:$0xff]
      %v398 = vld [vmem:[%s2 + $0x40] sm:$0xff]
      %v399 = vld [vmem:[%s2 + $0x48] sm:$0xff]
      %v400 = vld [vmem:[%s2 + $0x50] sm:$0xff]
      %v401 = vld [vmem:[%s2 + $0x58] sm:$0xff]
      %v402 = vld [vmem:[%s2 + $0x60] sm:$0xff]
      %v403 = vld [vmem:[%s2 + $0x68] sm:$0xff]
      %v404 = vld [vmem:[%s2 + $0x70] sm:$0xff]
      %v405 = vld [vmem:[%s2 + $0x78] sm:$0xff]
      %v406 = vld [vmem:[%s2 + $0x80] sm:$0xff]
      %v407 = vld [vmem:[%s2 + $0x88] sm:$0xff]
      %v408 = vld [vmem:[%s2 + $0x90] sm:$0xff]
      %v409 = vld [vmem:[%s2 + $0x98] sm:$0xff]
      %v410 = vld [vmem:[%s2 + $0xa0] sm:$0xff]
      %vm411 = vcmask 195584
      %v413 = vsel %vm411, %v326, 0
      %v416 = vsel %vm411, %v327, 0
      %v419 = vsel %vm411, %v328, 0
      %v422 = vsel %vm411, %v329, 0
      %v425 = vsel %vm411, %v330, 0
      %v428 = vsel %vm411, %v331, 0
      %v431 = vsel %vm411, %v332, 0
      %v434 = vsel %vm411, %v333, 0
      %v437 = vsel %vm411, %v334, 0
      %v440 = vsel %vm411, %v335, 0
      %v443 = vsel %vm411, %v336, 0
      %v446 = vsel %vm411, %v337, 0
      %v449 = vsel %vm411, %v338, 0
      %v452 = vsel %vm411, %v339, 0
      %v455 = vsel %vm411, %v340, 0
      %v458 = vsel %vm411, %v341, 0
      %v461 = vsel %vm411, %v342, 0
      %v464 = vsel %vm411, %v343, 0
      %v467 = vsel %vm411, %v344, 0
      %v470 = vsel %vm411, %v345, 0
      %v473 = vsel %vm411, %v346, 0
      %v476 = vsel %vm411, %v347, 0
      %v479 = vsel %vm411, %v348, 0
      %v482 = vsel %vm411, %v349, 0
      %v485 = vsel %vm411, %v350, 0
      %v488 = vsel %vm411, %v351, 0
      %v491 = vsel %vm411, %v352, 0
      %v494 = vsel %vm411, %v353, 0
      %v497 = vsel %vm411, %v354, 0
      %v500 = vsel %vm411, %v355, 0
      %v503 = vsel %vm411, %v356, 0
      %v506 = vsel %vm411, %v357, 0
      %v509 = vsel %vm411, %v358, 0
      %v512 = vsel %vm411, %v359, 0
      %v515 = vsel %vm411, %v360, 0
      %v518 = vsel %vm411, %v361, 0
      %v521 = vsel %vm411, %v362, 0
      %v524 = vsel %vm411, %v363, 0
      %v527 = vsel %vm411, %v364, 0
      %v530 = vsel %vm411, %v365, 0
      %v533 = vsel %vm411, %v366, 0
      %v536 = vsel %vm411, %v367, 0
      %v539 = vsel %vm411, %v368, 0
      %v542 = vsel %vm411, %v369, 0
      %v545 = vsel %vm411, %v370, 0
      %v548 = vsel %vm411, %v371, 0
      %v551 = vsel %vm411, %v372, 0
      %v554 = vsel %vm411, %v373, 0
      %v557 = vsel %vm411, %v374, 0
      %v560 = vsel %vm411, %v375, 0
      %v563 = vsel %vm411, %v376, 0
      %v566 = vsel %vm411, %v377, 0
      %v569 = vsel %vm411, %v378, 0
      %v572 = vsel %vm411, %v379, 0
      %v575 = vsel %vm411, %v380, 0
      %v578 = vsel %vm411, %v381, 0
      %v581 = vsel %vm411, %v382, 0
      %v584 = vsel %vm411, %v383, 0
      %v587 = vsel %vm411, %v384, 0
      %v590 = vsel %vm411, %v385, 0
      %v593 = vsel %vm411, %v386, 0
      %v596 = vsel %vm411, %v387, 0
      %v599 = vsel %vm411, %v388, 0
      %v602 = vsel %vm411, %v389, 0
      %604 = vmatprep.subr.mxu0 0.0
      %605 = vmatpush1.msra.mxu0 0.0
      %606 = vmatprep.subr.mxu0 0.0
      %607 = vmatpush1.msra.mxu0 0.0
      %608 = vmatprep.subr.mxu0 0.0
      %609 = vmatpush1.msra.mxu0 0.0
      %610 = vmatprep.subr.mxu0 0.0
      %611 = vmatpush1.msra.mxu0 0.0
      %612 = vmatprep.subr.mxu0 0.0
      %613 = vmatpush1.msra.mxu0 0.0
      %614 = vmatprep.subr.mxu0 0.0
      %615 = vmatpush1.msra.mxu0 0.0
      %616 = vmatprep.subr.mxu0 0.0
      %617 = vmatpush1.msra.mxu0 0.0
      %618 = vmatprep.subr.mxu0 0.0
      %619 = vmatpush1.msra.mxu0 0.0
      %620 = vmatprep.subr.mxu0 0.0
      %621 = vmatpush1.msra.mxu0 0.0
      %622 = vmatprep.subr.mxu0 0.0
      %623 = vmatpush1.msra.mxu0 0.0
      %624 = vmatprep.subr.mxu0 0.0
      %625 = vmatpush1.msra.mxu0 0.0
      %626 = vmatprep.subr.mxu0 0.0
      %627 = vmatpush1.msra.mxu0 0.0
      %628 = vmatprep.subr.mxu0 0.0
      %629 = vmatpush1.msra.mxu0 0.0
      %630 = vmatprep.subr.mxu0 %v405
      %631 = vmatpush1.msra.mxu0 %v404
      %632 = vmatprep.subr.mxu0 %v398
      %633 = vmatpush1.msra.mxu0 %v397
      %634 = vmatprep.subr.mxu0 %v391
      %635 = vmatpush1.msra.mxu0 %v390
      %636 = vmatprep.subr.mxu0 0.0
      %637 = vmatpush2.msra.mxu0 0.0
      %638 = vmatprep.subr.mxu0 0.0
      %639 = vmatpush2.msra.mxu0 0.0
      %640 = vmatprep.subr.mxu0 0.0
      %641 = vmatpush2.msra.mxu0 0.0
      %642 = vmatprep.subr.mxu0 0.0
      %643 = vmatpush2.msra.mxu0 0.0
      %644 = vmatprep.subr.mxu0 0.0
      %645 = vmatpush2.msra.mxu0 0.0
      %646 = vmatprep.subr.mxu0 0.0
      %647 = vmatpush2.msra.mxu0 0.0
      %648 = vmatprep.subr.mxu0 0.0
      %649 = vmatpush2.msra.mxu0 0.0
      %650 = vmatprep.subr.mxu0 0.0
      %651 = vmatpush2.msra.mxu0 0.0
      %652 = vmatprep.subr.mxu0 0.0
      %653 = vmatpush2.msra.mxu0 0.0
      %654 = vmatprep.subr.mxu0 0.0
      %655 = vmatpush2.msra.mxu0 0.0
      %656 = vmatprep.subr.mxu0 0.0
      %657 = vmatpush2.msra.mxu0 0.0
      %658 = vmatprep.subr.mxu0 0.0
      %659 = vmatpush2.msra.mxu0 0.0
      %660 = vmatprep.subr.mxu0 0.0
      %661 = vmatpush2.msra.mxu0 0.0
      %662 = vmatprep.subr.mxu0 0.0
      %663 = vmatpush2.msra.mxu0 0.0
      %664 = vmatprep.subr.mxu0 0.0
      %665 = vmatpush2.msra.mxu0 0.0
      %666 = vmatprep.subr.mxu0 0.0
      %667 = vmatpush2.msra.mxu0 0.0
      %668 = vmatprep.mubr.f32.mxu0 0.0
      %669 = vmatmul.mubr.f32.gmra.mxu0 %v413
      %v670 = vpop.f32.mrf.mxu0
      %v671 = vadd.f32 0.0, %v670
      %v672 = vpop.f32.mrf.mxu0
      %v673 = vadd.f32 0.0, %v672
      %674 = vmatprep.mubr.f32.mxu0 0.0
      %675 = vmatmul.mubr.f32.gmra.mxu0 %v416
      %v676 = vpop.f32.mrf.mxu0
      %v677 = vadd.f32 0.0, %v676
      %v678 = vpop.f32.mrf.mxu0
      %v679 = vadd.f32 0.0, %v678
      %680 = vmatprep.mubr.f32.mxu0 0.0
      %681 = vmatmul.mubr.f32.gmra.mxu0 %v419
      %v682 = vpop.f32.mrf.mxu0
      %v683 = vadd.f32 0.0, %v682
      %v684 = vpop.f32.mrf.mxu0
      %v685 = vadd.f32 0.0, %v684
      %686 = vmatprep.mubr.f32.mxu0 0.0
      %687 = vmatmul.mubr.f32.gmra.mxu0 %v422
      %v688 = vpop.f32.mrf.mxu0
      %v689 = vadd.f32 0.0, %v688
      %v690 = vpop.f32.mrf.mxu0
      %v691 = vadd.f32 0.0, %v690
      %692 = vmatprep.mubr.f32.mxu0 0.0
      %693 = vmatmul.mubr.f32.gmra.mxu0 %v425
      %v694 = vpop.f32.mrf.mxu0
      %v695 = vadd.f32 0.0, %v694
      %v696 = vpop.f32.mrf.mxu0
      %v697 = vadd.f32 0.0, %v696
      %698 = vmatprep.mubr.f32.mxu0 0.0
      %699 = vmatmul.mubr.f32.gmra.mxu0 %v428
      %v700 = vpop.f32.mrf.mxu0
      %v701 = vadd.f32 0.0, %v700
      %v702 = vpop.f32.mrf.mxu0
      %v703 = vadd.f32 0.0, %v702
      %704 = vmatprep.mubr.f32.mxu0 0.0
      %705 = vmatmul.mubr.f32.gmra.mxu0 %v431
      %v706 = vpop.f32.mrf.mxu0
      %v707 = vadd.f32 0.0, %v706
      %v708 = vpop.f32.mrf.mxu0
      %v709 = vadd.f32 0.0, %v708
      %710 = vmatprep.mubr.f32.mxu0 0.0
      %711 = vmatmul.mubr.f32.gmra.mxu0 %v434
      %v712 = vpop.f32.mrf.mxu0
      %v713 = vadd.f32 0.0, %v712
      %v714 = vpop.f32.mrf.mxu0
      %v715 = vadd.f32 0.0, %v714
      %716 = vmatprep.mubr.f32.mxu0 0.0
      %717 = vmatmul.mubr.f32.gmra.mxu0 %v437
      %v718 = vpop.f32.mrf.mxu0
      %v719 = vadd.f32 0.0, %v718
      %v720 = vpop.f32.mrf.mxu0
      %v721 = vadd.f32 0.0, %v720
      %722 = vmatprep.mubr.f32.mxu0 0.0
      %723 = vmatmul.mubr.f32.gmra.mxu0 %v440
      %v724 = vpop.f32.mrf.mxu0
      %v725 = vadd.f32 0.0, %v724
      %v726 = vpop.f32.mrf.mxu0
      %v727 = vadd.f32 0.0, %v726
      %728 = vmatprep.mubr.f32.mxu0 0.0
      %729 = vmatmul.mubr.f32.gmra.mxu0 %v443
      %v730 = vpop.f32.mrf.mxu0
      %v731 = vadd.f32 0.0, %v730
      %v732 = vpop.f32.mrf.mxu0
      %v733 = vadd.f32 0.0, %v732
      %734 = vmatprep.mubr.f32.mxu0 0.0
      %735 = vmatmul.mubr.f32.gmra.mxu0 %v446
      %v736 = vpop.f32.mrf.mxu0
      %v737 = vadd.f32 0.0, %v736
      %v738 = vpop.f32.mrf.mxu0
      %v739 = vadd.f32 0.0, %v738
      %740 = vmatprep.mubr.f32.mxu0 0.0
      %741 = vmatmul.mubr.f32.gmra.mxu0 %v449
      %v742 = vpop.f32.mrf.mxu0
      %v743 = vadd.f32 0.0, %v742
      %v744 = vpop.f32.mrf.mxu0
      %v745 = vadd.f32 0.0, %v744
      %746 = vmatprep.mubr.f32.mxu0 0.0
      %747 = vmatmul.mubr.f32.gmra.mxu0 %v452
      %v748 = vpop.f32.mrf.mxu0
      %v749 = vadd.f32 0.0, %v748
      %v750 = vpop.f32.mrf.mxu0
      %v751 = vadd.f32 0.0, %v750
      %752 = vmatprep.mubr.f32.mxu0 0.0
      %753 = vmatmul.mubr.f32.gmra.mxu0 %v455
      %v754 = vpop.f32.mrf.mxu0
      %v755 = vadd.f32 0.0, %v754
      %v756 = vpop.f32.mrf.mxu0
      %v757 = vadd.f32 0.0, %v756
      %758 = vmatprep.mubr.f32.mxu0 0.0
      %759 = vmatmul.mubr.f32.gmra.mxu0 %v458
      %v760 = vpop.f32.mrf.mxu0
      %v761 = vadd.f32 0.0, %v760
      %v762 = vpop.f32.mrf.mxu0
      %v763 = vadd.f32 0.0, %v762
      %764 = vmatprep.mubr.f32.mxu0 0.0
      %765 = vmatmul.mubr.f32.gmra.mxu0 %v461
      %v766 = vpop.f32.mrf.mxu0
      %v767 = vadd.f32 0.0, %v766
      %v768 = vpop.f32.mrf.mxu0
      %v769 = vadd.f32 0.0, %v768
      %770 = vmatprep.mubr.f32.mxu0 0.0
      %771 = vmatmul.mubr.f32.gmra.mxu0 %v464
      %v772 = vpop.f32.mrf.mxu0
      %v773 = vadd.f32 0.0, %v772
      %v774 = vpop.f32.mrf.mxu0
      %v775 = vadd.f32 0.0, %v774
      %776 = vmatprep.mubr.f32.mxu0 0.0
      %777 = vmatmul.mubr.f32.gmra.mxu0 %v467
      %v778 = vpop.f32.mrf.mxu0
      %v779 = vadd.f32 0.0, %v778
      %v780 = vpop.f32.mrf.mxu0
      %v781 = vadd.f32 0.0, %v780
      %782 = vmatprep.mubr.f32.mxu0 0.0
      %783 = vmatmul.mubr.f32.gmra.mxu0 %v470
      %v784 = vpop.f32.mrf.mxu0
      %v785 = vadd.f32 0.0, %v784
      %v786 = vpop.f32.mrf.mxu0
      %v787 = vadd.f32 0.0, %v786
      %788 = vmatprep.mubr.f32.mxu0 0.0
      %789 = vmatmul.mubr.f32.gmra.mxu0 %v473
      %v790 = vpop.f32.mrf.mxu0
      %v791 = vadd.f32 0.0, %v790
      %v792 = vpop.f32.mrf.mxu0
      %v793 = vadd.f32 0.0, %v792
      %794 = vmatprep.mubr.f32.mxu0 0.0
      %795 = vmatmul.mubr.f32.gmra.mxu0 %v476
      %v796 = vpop.f32.mrf.mxu0
      %v797 = vadd.f32 0.0, %v796
      %v798 = vpop.f32.mrf.mxu0
      %v799 = vadd.f32 0.0, %v798
      %800 = vmatprep.mubr.f32.mxu0 0.0
      %801 = vmatmul.mubr.f32.gmra.mxu0 %v479
      %v802 = vpop.f32.mrf.mxu0
      %v803 = vadd.f32 0.0, %v802
      %v804 = vpop.f32.mrf.mxu0
      %v805 = vadd.f32 0.0, %v804
      %806 = vmatprep.mubr.f32.mxu0 0.0
      %807 = vmatmul.mubr.f32.gmra.mxu0 %v482
      %v808 = vpop.f32.mrf.mxu0
      %v809 = vadd.f32 0.0, %v808
      %v810 = vpop.f32.mrf.mxu0
      %v811 = vadd.f32 0.0, %v810
      %812 = vmatprep.mubr.f32.mxu0 0.0
      %813 = vmatmul.mubr.f32.gmra.mxu0 %v485
      %v814 = vpop.f32.mrf.mxu0
      %v815 = vadd.f32 0.0, %v814
      %v816 = vpop.f32.mrf.mxu0
      %v817 = vadd.f32 0.0, %v816
      %818 = vmatprep.mubr.f32.mxu0 0.0
      %819 = vmatmul.mubr.f32.gmra.mxu0 %v488
      %v820 = vpop.f32.mrf.mxu0
      %v821 = vadd.f32 0.0, %v820
      %v822 = vpop.f32.mrf.mxu0
      %v823 = vadd.f32 0.0, %v822
      %824 = vmatprep.mubr.f32.mxu0 0.0
      %825 = vmatmul.mubr.f32.gmra.mxu0 %v491
      %v826 = vpop.f32.mrf.mxu0
      %v827 = vadd.f32 0.0, %v826
      %v828 = vpop.f32.mrf.mxu0
      %v829 = vadd.f32 0.0, %v828
      %830 = vmatprep.mubr.f32.mxu0 0.0
      %831 = vmatmul.mubr.f32.gmra.mxu0 %v494
      %v832 = vpop.f32.mrf.mxu0
      %v833 = vadd.f32 0.0, %v832
      %v834 = vpop.f32.mrf.mxu0
      %v835 = vadd.f32 0.0, %v834
      %836 = vmatprep.mubr.f32.mxu0 0.0
      %837 = vmatmul.mubr.f32.gmra.mxu0 %v497
      %v838 = vpop.f32.mrf.mxu0
      %v839 = vadd.f32 0.0, %v838
      %v840 = vpop.f32.mrf.mxu0
      %v841 = vadd.f32 0.0, %v840
      %842 = vmatprep.mubr.f32.mxu0 0.0
      %843 = vmatmul.mubr.f32.gmra.mxu0 %v500
      %v844 = vpop.f32.mrf.mxu0
      %v845 = vadd.f32 0.0, %v844
      %v846 = vpop.f32.mrf.mxu0
      %v847 = vadd.f32 0.0, %v846
      %848 = vmatprep.mubr.f32.mxu0 0.0
      %849 = vmatmul.mubr.f32.gmra.mxu0 %v503
      %v850 = vpop.f32.mrf.mxu0
      %v851 = vadd.f32 0.0, %v850
      %v852 = vpop.f32.mrf.mxu0
      %v853 = vadd.f32 0.0, %v852
      %854 = vmatprep.mubr.f32.mxu0 0.0
      %855 = vmatmul.mubr.f32.gmra.mxu0 %v506
      %v856 = vpop.f32.mrf.mxu0
      %v857 = vadd.f32 0.0, %v856
      %v858 = vpop.f32.mrf.mxu0
      %v859 = vadd.f32 0.0, %v858
      %860 = vmatprep.mubr.f32.mxu0 0.0
      %861 = vmatmul.mubr.f32.gmra.mxu0 %v509
      %v862 = vpop.f32.mrf.mxu0
      %v863 = vadd.f32 0.0, %v862
      %v864 = vpop.f32.mrf.mxu0
      %v865 = vadd.f32 0.0, %v864
      %866 = vmatprep.mubr.f32.mxu0 0.0
      %867 = vmatmul.mubr.f32.gmra.mxu0 %v512
      %v868 = vpop.f32.mrf.mxu0
      %v869 = vadd.f32 0.0, %v868
      %v870 = vpop.f32.mrf.mxu0
      %v871 = vadd.f32 0.0, %v870
      %872 = vmatprep.mubr.f32.mxu0 0.0
      %873 = vmatmul.mubr.f32.gmra.mxu0 %v515
      %v874 = vpop.f32.mrf.mxu0
      %v875 = vadd.f32 0.0, %v874
      %v876 = vpop.f32.mrf.mxu0
      %v877 = vadd.f32 0.0, %v876
      %878 = vmatprep.mubr.f32.mxu0 0.0
      %879 = vmatmul.mubr.f32.gmra.mxu0 %v518
      %v880 = vpop.f32.mrf.mxu0
      %v881 = vadd.f32 0.0, %v880
      %v882 = vpop.f32.mrf.mxu0
      %v883 = vadd.f32 0.0, %v882
      %884 = vmatprep.mubr.f32.mxu0 0.0
      %885 = vmatmul.mubr.f32.gmra.mxu0 %v521
      %v886 = vpop.f32.mrf.mxu0
      %v887 = vadd.f32 0.0, %v886
      %v888 = vpop.f32.mrf.mxu0
      %v889 = vadd.f32 0.0, %v888
      %890 = vmatprep.mubr.f32.mxu0 0.0
      %891 = vmatmul.mubr.f32.gmra.mxu0 %v524
      %v892 = vpop.f32.mrf.mxu0
      %v893 = vadd.f32 0.0, %v892
      %v894 = vpop.f32.mrf.mxu0
      %v895 = vadd.f32 0.0, %v894
      %896 = vmatprep.mubr.f32.mxu0 0.0
      %897 = vmatmul.mubr.f32.gmra.mxu0 %v527
      %v898 = vpop.f32.mrf.mxu0
      %v899 = vadd.f32 0.0, %v898
      %v900 = vpop.f32.mrf.mxu0
      %v901 = vadd.f32 0.0, %v900
      %902 = vmatprep.mubr.f32.mxu0 0.0
      %903 = vmatmul.mubr.f32.gmra.mxu0 %v530
      %v904 = vpop.f32.mrf.mxu0
      %v905 = vadd.f32 0.0, %v904
      %v906 = vpop.f32.mrf.mxu0
      %v907 = vadd.f32 0.0, %v906
      %908 = vmatprep.mubr.f32.mxu0 0.0
      %909 = vmatmul.mubr.f32.gmra.mxu0 %v533
      %v910 = vpop.f32.mrf.mxu0
      %v911 = vadd.f32 0.0, %v910
      %v912 = vpop.f32.mrf.mxu0
      %v913 = vadd.f32 0.0, %v912
      %914 = vmatprep.mubr.f32.mxu0 0.0
      %915 = vmatmul.mubr.f32.gmra.mxu0 %v536
      %v916 = vpop.f32.mrf.mxu0
      %v917 = vadd.f32 0.0, %v916
      %v918 = vpop.f32.mrf.mxu0
      %v919 = vadd.f32 0.0, %v918
      %920 = vmatprep.mubr.f32.mxu0 0.0
      %921 = vmatmul.mubr.f32.gmra.mxu0 %v539
      %v922 = vpop.f32.mrf.mxu0
      %v923 = vadd.f32 0.0, %v922
      %v924 = vpop.f32.mrf.mxu0
      %v925 = vadd.f32 0.0, %v924
      %926 = vmatprep.mubr.f32.mxu0 0.0
      %927 = vmatmul.mubr.f32.gmra.mxu0 %v542
      %v928 = vpop.f32.mrf.mxu0
      %v929 = vadd.f32 0.0, %v928
      %v930 = vpop.f32.mrf.mxu0
      %v931 = vadd.f32 0.0, %v930
      %932 = vmatprep.mubr.f32.mxu0 0.0
      %933 = vmatmul.mubr.f32.gmra.mxu0 %v545
      %v934 = vpop.f32.mrf.mxu0
      %v935 = vadd.f32 0.0, %v934
      %v936 = vpop.f32.mrf.mxu0
      %v937 = vadd.f32 0.0, %v936
      %938 = vmatprep.mubr.f32.mxu0 0.0
      %939 = vmatmul.mubr.f32.gmra.mxu0 %v548
      %v940 = vpop.f32.mrf.mxu0
      %v941 = vadd.f32 0.0, %v940
      %v942 = vpop.f32.mrf.mxu0
      %v943 = vadd.f32 0.0, %v942
      %944 = vmatprep.mubr.f32.mxu0 0.0
      %945 = vmatmul.mubr.f32.gmra.mxu0 %v551
      %v946 = vpop.f32.mrf.mxu0
      %v947 = vadd.f32 0.0, %v946
      %v948 = vpop.f32.mrf.mxu0
      %v949 = vadd.f32 0.0, %v948
      %950 = vmatprep.mubr.f32.mxu0 0.0
      %951 = vmatmul.mubr.f32.gmra.mxu0 %v554
      %v952 = vpop.f32.mrf.mxu0
      %v953 = vadd.f32 0.0, %v952
      %v954 = vpop.f32.mrf.mxu0
      %v955 = vadd.f32 0.0, %v954
      %956 = vmatprep.mubr.f32.mxu0 0.0
      %957 = vmatmul.mubr.f32.gmra.mxu0 %v557
      %v958 = vpop.f32.mrf.mxu0
      %v959 = vadd.f32 0.0, %v958
      %v960 = vpop.f32.mrf.mxu0
      %v961 = vadd.f32 0.0, %v960
      %962 = vmatprep.mubr.f32.mxu0 0.0
      %963 = vmatmul.mubr.f32.gmra.mxu0 %v560
      %v964 = vpop.f32.mrf.mxu0
      %v965 = vadd.f32 0.0, %v964
      %v966 = vpop.f32.mrf.mxu0
      %v967 = vadd.f32 0.0, %v966
      %968 = vmatprep.mubr.f32.mxu0 0.0
      %969 = vmatmul.mubr.f32.gmra.mxu0 %v563
      %v970 = vpop.f32.mrf.mxu0
      %v971 = vadd.f32 0.0, %v970
      %v972 = vpop.f32.mrf.mxu0
      %v973 = vadd.f32 0.0, %v972
      %974 = vmatprep.mubr.f32.mxu0 0.0
      %975 = vmatmul.mubr.f32.gmra.mxu0 %v566
      %v976 = vpop.f32.mrf.mxu0
      %v977 = vadd.f32 0.0, %v976
      %v978 = vpop.f32.mrf.mxu0
      %v979 = vadd.f32 0.0, %v978
      %980 = vmatprep.mubr.f32.mxu0 0.0
      %981 = vmatmul.mubr.f32.gmra.mxu0 %v569
      %v982 = vpop.f32.mrf.mxu0
      %v983 = vadd.f32 0.0, %v982
      %v984 = vpop.f32.mrf.mxu0
      %v985 = vadd.f32 0.0, %v984
      %986 = vmatprep.mubr.f32.mxu0 0.0
      %987 = vmatmul.mubr.f32.gmra.mxu0 %v572
      %v988 = vpop.f32.mrf.mxu0
      %v989 = vadd.f32 0.0, %v988
      %v990 = vpop.f32.mrf.mxu0
      %v991 = vadd.f32 0.0, %v990
      %992 = vmatprep.mubr.f32.mxu0 0.0
      %993 = vmatmul.mubr.f32.gmra.mxu0 %v575
      %v994 = vpop.f32.mrf.mxu0
      %v995 = vadd.f32 0.0, %v994
      %v996 = vpop.f32.mrf.mxu0
      %v997 = vadd.f32 0.0, %v996
      %998 = vmatprep.mubr.f32.mxu0 0.0
      %999 = vmatmul.mubr.f32.gmra.mxu0 %v578
      %v1000 = vpop.f32.mrf.mxu0
      %v1001 = vadd.f32 0.0, %v1000
      %v1002 = vpop.f32.mrf.mxu0
      %v1003 = vadd.f32 0.0, %v1002
      %1004 = vmatprep.mubr.f32.mxu0 0.0
      %1005 = vmatmul.mubr.f32.gmra.mxu0 %v581
      %v1006 = vpop.f32.mrf.mxu0
      %v1007 = vadd.f32 0.0, %v1006
      %v1008 = vpop.f32.mrf.mxu0
      %v1009 = vadd.f32 0.0, %v1008
      %1010 = vmatprep.mubr.f32.mxu0 0.0
      %1011 = vmatmul.mubr.f32.gmra.mxu0 %v584
      %v1012 = vpop.f32.mrf.mxu0
      %v1013 = vadd.f32 0.0, %v1012
      %v1014 = vpop.f32.mrf.mxu0
      %v1015 = vadd.f32 0.0, %v1014
      %1016 = vmatprep.mubr.f32.mxu0 0.0
      %1017 = vmatmul.mubr.f32.gmra.mxu0 %v587
      %v1018 = vpop.f32.mrf.mxu0
      %v1019 = vadd.f32 0.0, %v1018
      %v1020 = vpop.f32.mrf.mxu0
      %v1021 = vadd.f32 0.0, %v1020
      %1022 = vmatprep.mubr.f32.mxu0 0.0
      %1023 = vmatmul.mubr.f32.gmra.mxu0 %v590
      %v1024 = vpop.f32.mrf.mxu0
      %v1025 = vadd.f32 0.0, %v1024
      %v1026 = vpop.f32.mrf.mxu0
      %v1027 = vadd.f32 0.0, %v1026
      %1028 = vmatprep.mubr.f32.mxu0 0.0
      %1029 = vmatmul.mubr.f32.gmra.mxu0 %v593
      %v1030 = vpop.f32.mrf.mxu0
      %v1031 = vadd.f32 0.0, %v1030
      %v1032 = vpop.f32.mrf.mxu0
      %v1033 = vadd.f32 0.0, %v1032
      %1034 = vmatprep.mubr.f32.mxu0 0.0
      %1035 = vmatmul.mubr.f32.gmra.mxu0 %v596
      %v1036 = vpop.f32.mrf.mxu0
      %v1037 = vadd.f32 0.0, %v1036
      %v1038 = vpop.f32.mrf.mxu0
      %v1039 = vadd.f32 0.0, %v1038
      %1040 = vmatprep.mubr.f32.mxu0 0.0
      %1041 = vmatmul.mubr.f32.gmra.mxu0 %v599
      %v1042 = vpop.f32.mrf.mxu0
      %v1043 = vadd.f32 0.0, %v1042
      %v1044 = vpop.f32.mrf.mxu0
      %v1045 = vadd.f32 0.0, %v1044
      %1046 = vmatprep.mubr.f32.mxu0 0.0
      %1047 = vmatmul.mubr.f32.gmra.mxu0 %v602
      %v1048 = vpop.f32.mrf.mxu0
      %v1049 = vadd.f32 0.0, %v1048
      %v1050 = vpop.f32.mrf.mxu0
      %v1051 = vadd.f32 0.0, %v1050
      %1052 = vdwg.mxu0
      %1053 = vmatprep.subr.mxu0 0.0
      %1054 = vmatpush1.msra.mxu0 0.0
      %1055 = vmatprep.subr.mxu0 0.0
      %1056 = vmatpush1.msra.mxu0 0.0
      %1057 = vmatprep.subr.mxu0 0.0
      %1058 = vmatpush1.msra.mxu0 0.0
      %1059 = vmatprep.subr.mxu0 0.0
      %1060 = vmatpush1.msra.mxu0 0.0
      %1061 = vmatprep.subr.mxu0 0.0
      %1062 = vmatpush1.msra.mxu0 0.0
      %1063 = vmatprep.subr.mxu0 0.0
      %1064 = vmatpush1.msra.mxu0 0.0
      %1065 = vmatprep.subr.mxu0 0.0
      %1066 = vmatpush1.msra.mxu0 0.0
      %1067 = vmatprep.subr.mxu0 0.0
      %1068 = vmatpush1.msra.mxu0 0.0
      %1069 = vmatprep.subr.mxu0 0.0
      %1070 = vmatpush1.msra.mxu0 0.0
      %1071 = vmatprep.subr.mxu0 0.0
      %1072 = vmatpush1.msra.mxu0 0.0
      %1073 = vmatprep.subr.mxu0 0.0
      %1074 = vmatpush1.msra.mxu0 0.0
      %1075 = vmatprep.subr.mxu0 0.0
      %1076 = vmatpush1.msra.mxu0 0.0
      %1077 = vmatprep.subr.mxu0 0.0
      %1078 = vmatpush1.msra.mxu0 0.0
      %1079 = vmatprep.subr.mxu0 %v407
      %1080 = vmatpush1.msra.mxu0 %v406
      %1081 = vmatprep.subr.mxu0 %v400
      %1082 = vmatpush1.msra.mxu0 %v399
      %1083 = vmatprep.subr.mxu0 %v393
      %1084 = vmatpush1.msra.mxu0 %v392
      %1085 = vmatprep.subr.mxu0 0.0
      %1086 = vmatpush2.msra.mxu0 0.0
      %1087 = vmatprep.subr.mxu0 0.0
      %1088 = vmatpush2.msra.mxu0 0.0
      %1089 = vmatprep.subr.mxu0 0.0
      %1090 = vmatpush2.msra.mxu0 0.0
      %1091 = vmatprep.subr.mxu0 0.0
      %1092 = vmatpush2.msra.mxu0 0.0
      %1093 = vmatprep.subr.mxu0 0.0
      %1094 = vmatpush2.msra.mxu0 0.0
      %1095 = vmatprep.subr.mxu0 0.0
      %1096 = vmatpush2.msra.mxu0 0.0
      %1097 = vmatprep.subr.mxu0 0.0
      %1098 = vmatpush2.msra.mxu0 0.0
      %1099 = vmatprep.subr.mxu0 0.0
      %1100 = vmatpush2.msra.mxu0 0.0
      %1101 = vmatprep.subr.mxu0 0.0
      %1102 = vmatpush2.msra.mxu0 0.0
      %1103 = vmatprep.subr.mxu0 0.0
      %1104 = vmatpush2.msra.mxu0 0.0
      %1105 = vmatprep.subr.mxu0 0.0
      %1106 = vmatpush2.msra.mxu0 0.0
      %1107 = vmatprep.subr.mxu0 0.0
      %1108 = vmatpush2.msra.mxu0 0.0
      %1109 = vmatprep.subr.mxu0 0.0
      %1110 = vmatpush2.msra.mxu0 0.0
      %1111 = vmatprep.subr.mxu0 0.0
      %1112 = vmatpush2.msra.mxu0 0.0
      %1113 = vmatprep.subr.mxu0 0.0
      %1114 = vmatpush2.msra.mxu0 0.0
      %1115 = vmatprep.subr.mxu0 0.0
      %1116 = vmatpush2.msra.mxu0 0.0
      %1117 = vmatprep.mubr.f32.mxu0 0.0
      %1118 = vmatmul.mubr.f32.gmra.mxu0 %v413
      %v1119 = vpop.f32.mrf.mxu0
      %v1120 = vadd.f32 0.0, %v1119
      %v1121 = vpop.f32.mrf.mxu0
      %v1122 = vadd.f32 0.0, %v1121
      %1123 = vmatprep.mubr.f32.mxu0 0.0
      %1124 = vmatmul.mubr.f32.gmra.mxu0 %v416
      %v1125 = vpop.f32.mrf.mxu0
      %v1126 = vadd.f32 0.0, %v1125
      %v1127 = vpop.f32.mrf.mxu0
      %v1128 = vadd.f32 0.0, %v1127
      %1129 = vmatprep.mubr.f32.mxu0 0.0
      %1130 = vmatmul.mubr.f32.gmra.mxu0 %v419
      %v1131 = vpop.f32.mrf.mxu0
      %v1132 = vadd.f32 0.0, %v1131
      %v1133 = vpop.f32.mrf.mxu0
      %v1134 = vadd.f32 0.0, %v1133
      %1135 = vmatprep.mubr.f32.mxu0 0.0
      %1136 = vmatmul.mubr.f32.gmra.mxu0 %v422
      %v1137 = vpop.f32.mrf.mxu0
      %v1138 = vadd.f32 0.0, %v1137
      %v1139 = vpop.f32.mrf.mxu0
      %v1140 = vadd.f32 0.0, %v1139
      %1141 = vmatprep.mubr.f32.mxu0 0.0
      %1142 = vmatmul.mubr.f32.gmra.mxu0 %v425
      %v1143 = vpop.f32.mrf.mxu0
      %v1144 = vadd.f32 0.0, %v1143
      %v1145 = vpop.f32.mrf.mxu0
      %v1146 = vadd.f32 0.0, %v1145
      %1147 = vmatprep.mubr.f32.mxu0 0.0
      %1148 = vmatmul.mubr.f32.gmra.mxu0 %v428
      %v1149 = vpop.f32.mrf.mxu0
      %v1150 = vadd.f32 0.0, %v1149
      %v1151 = vpop.f32.mrf.mxu0
      %v1152 = vadd.f32 0.0, %v1151
      %1153 = vmatprep.mubr.f32.mxu0 0.0
      %1154 = vmatmul.mubr.f32.gmra.mxu0 %v431
      %v1155 = vpop.f32.mrf.mxu0
      %v1156 = vadd.f32 0.0, %v1155
      %v1157 = vpop.f32.mrf.mxu0
      %v1158 = vadd.f32 0.0, %v1157
      %1159 = vmatprep.mubr.f32.mxu0 0.0
      %1160 = vmatmul.mubr.f32.gmra.mxu0 %v434
      %v1161 = vpop.f32.mrf.mxu0
      %v1162 = vadd.f32 0.0, %v1161
      %v1163 = vpop.f32.mrf.mxu0
      %v1164 = vadd.f32 0.0, %v1163
      %1165 = vmatprep.mubr.f32.mxu0 0.0
      %1166 = vmatmul.mubr.f32.gmra.mxu0 %v437
      %v1167 = vpop.f32.mrf.mxu0
      %v1168 = vadd.f32 0.0, %v1167
      %v1169 = vpop.f32.mrf.mxu0
      %v1170 = vadd.f32 0.0, %v1169
      %1171 = vmatprep.mubr.f32.mxu0 0.0
      %1172 = vmatmul.mubr.f32.gmra.mxu0 %v440
      %v1173 = vpop.f32.mrf.mxu0
      %v1174 = vadd.f32 0.0, %v1173
      %v1175 = vpop.f32.mrf.mxu0
      %v1176 = vadd.f32 0.0, %v1175
      %1177 = vmatprep.mubr.f32.mxu0 0.0
      %1178 = vmatmul.mubr.f32.gmra.mxu0 %v443
      %v1179 = vpop.f32.mrf.mxu0
      %v1180 = vadd.f32 0.0, %v1179
      %v1181 = vpop.f32.mrf.mxu0
      %v1182 = vadd.f32 0.0, %v1181
      %1183 = vmatprep.mubr.f32.mxu0 0.0
      %1184 = vmatmul.mubr.f32.gmra.mxu0 %v446
      %v1185 = vpop.f32.mrf.mxu0
      %v1186 = vadd.f32 0.0, %v1185
      %v1187 = vpop.f32.mrf.mxu0
      %v1188 = vadd.f32 0.0, %v1187
      %1189 = vmatprep.mubr.f32.mxu0 0.0
      %1190 = vmatmul.mubr.f32.gmra.mxu0 %v449
      %v1191 = vpop.f32.mrf.mxu0
      %v1192 = vadd.f32 0.0, %v1191
      %v1193 = vpop.f32.mrf.mxu0
      %v1194 = vadd.f32 0.0, %v1193
      %1195 = vmatprep.mubr.f32.mxu0 0.0
      %1196 = vmatmul.mubr.f32.gmra.mxu0 %v452
      %v1197 = vpop.f32.mrf.mxu0
      %v1198 = vadd.f32 0.0, %v1197
      %v1199 = vpop.f32.mrf.mxu0
      %v1200 = vadd.f32 0.0, %v1199
      %1201 = vmatprep.mubr.f32.mxu0 0.0
      %1202 = vmatmul.mubr.f32.gmra.mxu0 %v455
      %v1203 = vpop.f32.mrf.mxu0
      %v1204 = vadd.f32 0.0, %v1203
      %v1205 = vpop.f32.mrf.mxu0
      %v1206 = vadd.f32 0.0, %v1205
      %1207 = vmatprep.mubr.f32.mxu0 0.0
      %1208 = vmatmul.mubr.f32.gmra.mxu0 %v458
      %v1209 = vpop.f32.mrf.mxu0
      %v1210 = vadd.f32 0.0, %v1209
      %v1211 = vpop.f32.mrf.mxu0
      %v1212 = vadd.f32 0.0, %v1211
      %1213 = vmatprep.mubr.f32.mxu0 0.0
      %1214 = vmatmul.mubr.f32.gmra.mxu0 %v461
      %v1215 = vpop.f32.mrf.mxu0
      %v1216 = vadd.f32 0.0, %v1215
      %v1217 = vpop.f32.mrf.mxu0
      %v1218 = vadd.f32 0.0, %v1217
      %1219 = vmatprep.mubr.f32.mxu0 0.0
      %1220 = vmatmul.mubr.f32.gmra.mxu0 %v464
      %v1221 = vpop.f32.mrf.mxu0
      %v1222 = vadd.f32 0.0, %v1221
      %v1223 = vpop.f32.mrf.mxu0
      %v1224 = vadd.f32 0.0, %v1223
      %1225 = vmatprep.mubr.f32.mxu0 0.0
      %1226 = vmatmul.mubr.f32.gmra.mxu0 %v467
      %v1227 = vpop.f32.mrf.mxu0
      %v1228 = vadd.f32 0.0, %v1227
      %v1229 = vpop.f32.mrf.mxu0
      %v1230 = vadd.f32 0.0, %v1229
      %1231 = vmatprep.mubr.f32.mxu0 0.0
      %1232 = vmatmul.mubr.f32.gmra.mxu0 %v470
      %v1233 = vpop.f32.mrf.mxu0
      %v1234 = vadd.f32 0.0, %v1233
      %v1235 = vpop.f32.mrf.mxu0
      %v1236 = vadd.f32 0.0, %v1235
      %1237 = vmatprep.mubr.f32.mxu0 0.0
      %1238 = vmatmul.mubr.f32.gmra.mxu0 %v473
      %v1239 = vpop.f32.mrf.mxu0
      %v1240 = vadd.f32 0.0, %v1239
      %v1241 = vpop.f32.mrf.mxu0
      %v1242 = vadd.f32 0.0, %v1241
      %1243 = vmatprep.mubr.f32.mxu0 0.0
      %1244 = vmatmul.mubr.f32.gmra.mxu0 %v476
      %v1245 = vpop.f32.mrf.mxu0
      %v1246 = vadd.f32 0.0, %v1245
      %v1247 = vpop.f32.mrf.mxu0
      %v1248 = vadd.f32 0.0, %v1247
      %1249 = vmatprep.mubr.f32.mxu0 0.0
      %1250 = vmatmul.mubr.f32.gmra.mxu0 %v479
      %v1251 = vpop.f32.mrf.mxu0
      %v1252 = vadd.f32 0.0, %v1251
      %v1253 = vpop.f32.mrf.mxu0
      %v1254 = vadd.f32 0.0, %v1253
      %1255 = vmatprep.mubr.f32.mxu0 0.0
      %1256 = vmatmul.mubr.f32.gmra.mxu0 %v482
      %v1257 = vpop.f32.mrf.mxu0
      %v1258 = vadd.f32 0.0, %v1257
      %v1259 = vpop.f32.mrf.mxu0
      %v1260 = vadd.f32 0.0, %v1259
      %1261 = vmatprep.mubr.f32.mxu0 0.0
      %1262 = vmatmul.mubr.f32.gmra.mxu0 %v485
      %v1263 = vpop.f32.mrf.mxu0
      %v1264 = vadd.f32 0.0, %v1263
      %v1265 = vpop.f32.mrf.mxu0
      %v1266 = vadd.f32 0.0, %v1265
      %1267 = vmatprep.mubr.f32.mxu0 0.0
      %1268 = vmatmul.mubr.f32.gmra.mxu0 %v488
      %v1269 = vpop.f32.mrf.mxu0
      %v1270 = vadd.f32 0.0, %v1269
      %v1271 = vpop.f32.mrf.mxu0
      %v1272 = vadd.f32 0.0, %v1271
      %1273 = vmatprep.mubr.f32.mxu0 0.0
      %1274 = vmatmul.mubr.f32.gmra.mxu0 %v491
      %v1275 = vpop.f32.mrf.mxu0
      %v1276 = vadd.f32 0.0, %v1275
      %v1277 = vpop.f32.mrf.mxu0
      %v1278 = vadd.f32 0.0, %v1277
      %1279 = vmatprep.mubr.f32.mxu0 0.0
      %1280 = vmatmul.mubr.f32.gmra.mxu0 %v494
      %v1281 = vpop.f32.mrf.mxu0
      %v1282 = vadd.f32 0.0, %v1281
      %v1283 = vpop.f32.mrf.mxu0
      %v1284 = vadd.f32 0.0, %v1283
      %1285 = vmatprep.mubr.f32.mxu0 0.0
      %1286 = vmatmul.mubr.f32.gmra.mxu0 %v497
      %v1287 = vpop.f32.mrf.mxu0
      %v1288 = vadd.f32 0.0, %v1287
      %v1289 = vpop.f32.mrf.mxu0
      %v1290 = vadd.f32 0.0, %v1289
      %1291 = vmatprep.mubr.f32.mxu0 0.0
      %1292 = vmatmul.mubr.f32.gmra.mxu0 %v500
      %v1293 = vpop.f32.mrf.mxu0
      %v1294 = vadd.f32 0.0, %v1293
      %v1295 = vpop.f32.mrf.mxu0
      %v1296 = vadd.f32 0.0, %v1295
      %1297 = vmatprep.mubr.f32.mxu0 0.0
      %1298 = vmatmul.mubr.f32.gmra.mxu0 %v503
      %v1299 = vpop.f32.mrf.mxu0
      %v1300 = vadd.f32 0.0, %v1299
      %v1301 = vpop.f32.mrf.mxu0
      %v1302 = vadd.f32 0.0, %v1301
      %1303 = vmatprep.mubr.f32.mxu0 0.0
      %1304 = vmatmul.mubr.f32.gmra.mxu0 %v506
      %v1305 = vpop.f32.mrf.mxu0
      %v1306 = vadd.f32 0.0, %v1305
      %v1307 = vpop.f32.mrf.mxu0
      %v1308 = vadd.f32 0.0, %v1307
      %1309 = vmatprep.mubr.f32.mxu0 0.0
      %1310 = vmatmul.mubr.f32.gmra.mxu0 %v509
      %v1311 = vpop.f32.mrf.mxu0
      %v1312 = vadd.f32 0.0, %v1311
      %v1313 = vpop.f32.mrf.mxu0
      %v1314 = vadd.f32 0.0, %v1313
      %1315 = vmatprep.mubr.f32.mxu0 0.0
      %1316 = vmatmul.mubr.f32.gmra.mxu0 %v512
      %v1317 = vpop.f32.mrf.mxu0
      %v1318 = vadd.f32 0.0, %v1317
      %v1319 = vpop.f32.mrf.mxu0
      %v1320 = vadd.f32 0.0, %v1319
      %1321 = vmatprep.mubr.f32.mxu0 0.0
      %1322 = vmatmul.mubr.f32.gmra.mxu0 %v515
      %v1323 = vpop.f32.mrf.mxu0
      %v1324 = vadd.f32 0.0, %v1323
      %v1325 = vpop.f32.mrf.mxu0
      %v1326 = vadd.f32 0.0, %v1325
      %1327 = vmatprep.mubr.f32.mxu0 0.0
      %1328 = vmatmul.mubr.f32.gmra.mxu0 %v518
      %v1329 = vpop.f32.mrf.mxu0
      %v1330 = vadd.f32 0.0, %v1329
      %v1331 = vpop.f32.mrf.mxu0
      %v1332 = vadd.f32 0.0, %v1331
      %1333 = vmatprep.mubr.f32.mxu0 0.0
      %1334 = vmatmul.mubr.f32.gmra.mxu0 %v521
      %v1335 = vpop.f32.mrf.mxu0
      %v1336 = vadd.f32 0.0, %v1335
      %v1337 = vpop.f32.mrf.mxu0
      %v1338 = vadd.f32 0.0, %v1337
      %1339 = vmatprep.mubr.f32.mxu0 0.0
      %1340 = vmatmul.mubr.f32.gmra.mxu0 %v524
      %v1341 = vpop.f32.mrf.mxu0
      %v1342 = vadd.f32 0.0, %v1341
      %v1343 = vpop.f32.mrf.mxu0
      %v1344 = vadd.f32 0.0, %v1343
      %1345 = vmatprep.mubr.f32.mxu0 0.0
      %1346 = vmatmul.mubr.f32.gmra.mxu0 %v527
      %v1347 = vpop.f32.mrf.mxu0
      %v1348 = vadd.f32 0.0, %v1347
      %v1349 = vpop.f32.mrf.mxu0
      %v1350 = vadd.f32 0.0, %v1349
      %1351 = vmatprep.mubr.f32.mxu0 0.0
      %1352 = vmatmul.mubr.f32.gmra.mxu0 %v530
      %v1353 = vpop.f32.mrf.mxu0
      %v1354 = vadd.f32 0.0, %v1353
      %v1355 = vpop.f32.mrf.mxu0
      %v1356 = vadd.f32 0.0, %v1355
      %1357 = vmatprep.mubr.f32.mxu0 0.0
      %1358 = vmatmul.mubr.f32.gmra.mxu0 %v533
      %v1359 = vpop.f32.mrf.mxu0
      %v1360 = vadd.f32 0.0, %v1359
      %v1361 = vpop.f32.mrf.mxu0
      %v1362 = vadd.f32 0.0, %v1361
      %1363 = vmatprep.mubr.f32.mxu0 0.0
      %1364 = vmatmul.mubr.f32.gmra.mxu0 %v536
      %v1365 = vpop.f32.mrf.mxu0
      %v1366 = vadd.f32 0.0, %v1365
      %v1367 = vpop.f32.mrf.mxu0
      %v1368 = vadd.f32 0.0, %v1367
      %1369 = vmatprep.mubr.f32.mxu0 0.0
      %1370 = vmatmul.mubr.f32.gmra.mxu0 %v539
      %v1371 = vpop.f32.mrf.mxu0
      %v1372 = vadd.f32 0.0, %v1371
      %v1373 = vpop.f32.mrf.mxu0
      %v1374 = vadd.f32 0.0, %v1373
      %1375 = vmatprep.mubr.f32.mxu0 0.0
      %1376 = vmatmul.mubr.f32.gmra.mxu0 %v542
      %v1377 = vpop.f32.mrf.mxu0
      %v1378 = vadd.f32 0.0, %v1377
      %v1379 = vpop.f32.mrf.mxu0
      %v1380 = vadd.f32 0.0, %v1379
      %1381 = vmatprep.mubr.f32.mxu0 0.0
      %1382 = vmatmul.mubr.f32.gmra.mxu0 %v545
      %v1383 = vpop.f32.mrf.mxu0
      %v1384 = vadd.f32 0.0, %v1383
      %v1385 = vpop.f32.mrf.mxu0
      %v1386 = vadd.f32 0.0, %v1385
      %1387 = vmatprep.mubr.f32.mxu0 0.0
      %1388 = vmatmul.mubr.f32.gmra.mxu0 %v548
      %v1389 = vpop.f32.mrf.mxu0
      %v1390 = vadd.f32 0.0, %v1389
      %v1391 = vpop.f32.mrf.mxu0
      %v1392 = vadd.f32 0.0, %v1391
      %1393 = vmatprep.mubr.f32.mxu0 0.0
      %1394 = vmatmul.mubr.f32.gmra.mxu0 %v551
      %v1395 = vpop.f32.mrf.mxu0
      %v1396 = vadd.f32 0.0, %v1395
      %v1397 = vpop.f32.mrf.mxu0
      %v1398 = vadd.f32 0.0, %v1397
      %1399 = vmatprep.mubr.f32.mxu0 0.0
      %1400 = vmatmul.mubr.f32.gmra.mxu0 %v554
      %v1401 = vpop.f32.mrf.mxu0
      %v1402 = vadd.f32 0.0, %v1401
      %v1403 = vpop.f32.mrf.mxu0
      %v1404 = vadd.f32 0.0, %v1403
      %1405 = vmatprep.mubr.f32.mxu0 0.0
      %1406 = vmatmul.mubr.f32.gmra.mxu0 %v557
      %v1407 = vpop.f32.mrf.mxu0
      %v1408 = vadd.f32 0.0, %v1407
      %v1409 = vpop.f32.mrf.mxu0
      %v1410 = vadd.f32 0.0, %v1409
      %1411 = vmatprep.mubr.f32.mxu0 0.0
      %1412 = vmatmul.mubr.f32.gmra.mxu0 %v560
      %v1413 = vpop.f32.mrf.mxu0
      %v1414 = vadd.f32 0.0, %v1413
      %v1415 = vpop.f32.mrf.mxu0
      %v1416 = vadd.f32 0.0, %v1415
      %1417 = vmatprep.mubr.f32.mxu0 0.0
      %1418 = vmatmul.mubr.f32.gmra.mxu0 %v563
      %v1419 = vpop.f32.mrf.mxu0
      %v1420 = vadd.f32 0.0, %v1419
      %v1421 = vpop.f32.mrf.mxu0
      %v1422 = vadd.f32 0.0, %v1421
      %1423 = vmatprep.mubr.f32.mxu0 0.0
      %1424 = vmatmul.mubr.f32.gmra.mxu0 %v566
      %v1425 = vpop.f32.mrf.mxu0
      %v1426 = vadd.f32 0.0, %v1425
      %v1427 = vpop.f32.mrf.mxu0
      %v1428 = vadd.f32 0.0, %v1427
      %1429 = vmatprep.mubr.f32.mxu0 0.0
      %1430 = vmatmul.mubr.f32.gmra.mxu0 %v569
      %v1431 = vpop.f32.mrf.mxu0
      %v1432 = vadd.f32 0.0, %v1431
      %v1433 = vpop.f32.mrf.mxu0
      %v1434 = vadd.f32 0.0, %v1433
      %1435 = vmatprep.mubr.f32.mxu0 0.0
      %1436 = vmatmul.mubr.f32.gmra.mxu0 %v572
      %v1437 = vpop.f32.mrf.mxu0
      %v1438 = vadd.f32 0.0, %v1437
      %v1439 = vpop.f32.mrf.mxu0
      %v1440 = vadd.f32 0.0, %v1439
      %1441 = vmatprep.mubr.f32.mxu0 0.0
      %1442 = vmatmul.mubr.f32.gmra.mxu0 %v575
      %v1443 = vpop.f32.mrf.mxu0
      %v1444 = vadd.f32 0.0, %v1443
      %v1445 = vpop.f32.mrf.mxu0
      %v1446 = vadd.f32 0.0, %v1445
      %1447 = vmatprep.mubr.f32.mxu0 0.0
      %1448 = vmatmul.mubr.f32.gmra.mxu0 %v578
      %v1449 = vpop.f32.mrf.mxu0
      %v1450 = vadd.f32 0.0, %v1449
      %v1451 = vpop.f32.mrf.mxu0
      %v1452 = vadd.f32 0.0, %v1451
      %1453 = vmatprep.mubr.f32.mxu0 0.0
      %1454 = vmatmul.mubr.f32.gmra.mxu0 %v581
      %v1455 = vpop.f32.mrf.mxu0
      %v1456 = vadd.f32 0.0, %v1455
      %v1457 = vpop.f32.mrf.mxu0
      %v1458 = vadd.f32 0.0, %v1457
      %1459 = vmatprep.mubr.f32.mxu0 0.0
      %1460 = vmatmul.mubr.f32.gmra.mxu0 %v584
      %v1461 = vpop.f32.mrf.mxu0
      %v1462 = vadd.f32 0.0, %v1461
      %v1463 = vpop.f32.mrf.mxu0
      %v1464 = vadd.f32 0.0, %v1463
      %1465 = vmatprep.mubr.f32.mxu0 0.0
      %1466 = vmatmul.mubr.f32.gmra.mxu0 %v587
      %v1467 = vpop.f32.mrf.mxu0
      %v1468 = vadd.f32 0.0, %v1467
      %v1469 = vpop.f32.mrf.mxu0
      %v1470 = vadd.f32 0.0, %v1469
      %1471 = vmatprep.mubr.f32.mxu0 0.0
      %1472 = vmatmul.mubr.f32.gmra.mxu0 %v590
      %v1473 = vpop.f32.mrf.mxu0
      %v1474 = vadd.f32 0.0, %v1473
      %v1475 = vpop.f32.mrf.mxu0
      %v1476 = vadd.f32 0.0, %v1475
      %1477 = vmatprep.mubr.f32.mxu0 0.0
      %1478 = vmatmul.mubr.f32.gmra.mxu0 %v593
      %v1479 = vpop.f32.mrf.mxu0
      %v1480 = vadd.f32 0.0, %v1479
      %v1481 = vpop.f32.mrf.mxu0
      %v1482 = vadd.f32 0.0, %v1481
      %1483 = vmatprep.mubr.f32.mxu0 0.0
      %1484 = vmatmul.mubr.f32.gmra.mxu0 %v596
      %v1485 = vpop.f32.mrf.mxu0
      %v1486 = vadd.f32 0.0, %v1485
      %v1487 = vpop.f32.mrf.mxu0
      %v1488 = vadd.f32 0.0, %v1487
      %1489 = vmatprep.mubr.f32.mxu0 0.0
      %1490 = vmatmul.mubr.f32.gmra.mxu0 %v599
      %v1491 = vpop.f32.mrf.mxu0
      %v1492 = vadd.f32 0.0, %v1491
      %v1493 = vpop.f32.mrf.mxu0
      %v1494 = vadd.f32 0.0, %v1493
      %1495 = vmatprep.mubr.f32.mxu0 0.0
      %1496 = vmatmul.mubr.f32.gmra.mxu0 %v602
      %v1497 = vpop.f32.mrf.mxu0
      %v1498 = vadd.f32 0.0, %v1497
      %v1499 = vpop.f32.mrf.mxu0
      %v1500 = vadd.f32 0.0, %v1499
      %1501 = vdwg.mxu0
      %1502 = vmatprep.subr.mxu0 0.0
      %1503 = vmatpush1.msra.mxu0 0.0
      %1504 = vmatprep.subr.mxu0 0.0
      %1505 = vmatpush1.msra.mxu0 0.0
      %1506 = vmatprep.subr.mxu0 0.0
      %1507 = vmatpush1.msra.mxu0 0.0
      %1508 = vmatprep.subr.mxu0 0.0
      %1509 = vmatpush1.msra.mxu0 0.0
      %1510 = vmatprep.subr.mxu0 0.0
      %1511 = vmatpush1.msra.mxu0 0.0
      %1512 = vmatprep.subr.mxu0 0.0
      %1513 = vmatpush1.msra.mxu0 0.0
      %1514 = vmatprep.subr.mxu0 0.0
      %1515 = vmatpush1.msra.mxu0 0.0
      %1516 = vmatprep.subr.mxu0 0.0
      %1517 = vmatpush1.msra.mxu0 0.0
      %1518 = vmatprep.subr.mxu0 0.0
      %1519 = vmatpush1.msra.mxu0 0.0
      %1520 = vmatprep.subr.mxu0 0.0
      %1521 = vmatpush1.msra.mxu0 0.0
      %1522 = vmatprep.subr.mxu0 0.0
      %1523 = vmatpush1.msra.mxu0 0.0
      %1524 = vmatprep.subr.mxu0 0.0
      %1525 = vmatpush1.msra.mxu0 0.0
      %1526 = vmatprep.subr.mxu0 0.0
      %1527 = vmatpush1.msra.mxu0 0.0
      %1528 = vmatprep.subr.mxu0 %v409
      %1529 = vmatpush1.msra.mxu0 %v408
      %1530 = vmatprep.subr.mxu0 %v402
      %1531 = vmatpush1.msra.mxu0 %v401
      %1532 = vmatprep.subr.mxu0 %v395
      %1533 = vmatpush1.msra.mxu0 %v394
      %1534 = vmatprep.subr.mxu0 0.0
      %1535 = vmatpush2.msra.mxu0 0.0
      %1536 = vmatprep.subr.mxu0 0.0
      %1537 = vmatpush2.msra.mxu0 0.0
      %1538 = vmatprep.subr.mxu0 0.0
      %1539 = vmatpush2.msra.mxu0 0.0
      %1540 = vmatprep.subr.mxu0 0.0
      %1541 = vmatpush2.msra.mxu0 0.0
      %1542 = vmatprep.subr.mxu0 0.0
      %1543 = vmatpush2.msra.mxu0 0.0
      %1544 = vmatprep.subr.mxu0 0.0
      %1545 = vmatpush2.msra.mxu0 0.0
      %1546 = vmatprep.subr.mxu0 0.0
      %1547 = vmatpush2.msra.mxu0 0.0
      %1548 = vmatprep.subr.mxu0 0.0
      %1549 = vmatpush2.msra.mxu0 0.0
      %1550 = vmatprep.subr.mxu0 0.0
      %1551 = vmatpush2.msra.mxu0 0.0
      %1552 = vmatprep.subr.mxu0 0.0
      %1553 = vmatpush2.msra.mxu0 0.0
      %1554 = vmatprep.subr.mxu0 0.0
      %1555 = vmatpush2.msra.mxu0 0.0
      %1556 = vmatprep.subr.mxu0 0.0
      %1557 = vmatpush2.msra.mxu0 0.0
      %1558 = vmatprep.subr.mxu0 0.0
      %1559 = vmatpush2.msra.mxu0 0.0
      %1560 = vmatprep.subr.mxu0 0.0
      %1561 = vmatpush2.msra.mxu0 0.0
      %1562 = vmatprep.subr.mxu0 0.0
      %1563 = vmatpush2.msra.mxu0 0.0
      %1564 = vmatprep.subr.mxu0 0.0
      %1565 = vmatpush2.msra.mxu0 0.0
      %1566 = vmatprep.mubr.f32.mxu0 0.0
      %1567 = vmatmul.mubr.f32.gmra.mxu0 %v413
      %v1568 = vpop.f32.mrf.mxu0
      %v1569 = vadd.f32 0.0, %v1568
      %v1570 = vpop.f32.mrf.mxu0
      %v1571 = vadd.f32 0.0, %v1570
      %1572 = vmatprep.mubr.f32.mxu0 0.0
      %1573 = vmatmul.mubr.f32.gmra.mxu0 %v416
      %v1574 = vpop.f32.mrf.mxu0
      %v1575 = vadd.f32 0.0, %v1574
      %v1576 = vpop.f32.mrf.mxu0
      %v1577 = vadd.f32 0.0, %v1576
      %1578 = vmatprep.mubr.f32.mxu0 0.0
      %1579 = vmatmul.mubr.f32.gmra.mxu0 %v419
      %v1580 = vpop.f32.mrf.mxu0
      %v1581 = vadd.f32 0.0, %v1580
      %v1582 = vpop.f32.mrf.mxu0
      %v1583 = vadd.f32 0.0, %v1582
      %1584 = vmatprep.mubr.f32.mxu0 0.0
      %1585 = vmatmul.mubr.f32.gmra.mxu0 %v422
      %v1586 = vpop.f32.mrf.mxu0
      %v1587 = vadd.f32 0.0, %v1586
      %v1588 = vpop.f32.mrf.mxu0
      %v1589 = vadd.f32 0.0, %v1588
      %1590 = vmatprep.mubr.f32.mxu0 0.0
      %1591 = vmatmul.mubr.f32.gmra.mxu0 %v425
      %v1592 = vpop.f32.mrf.mxu0
      %v1593 = vadd.f32 0.0, %v1592
      %v1594 = vpop.f32.mrf.mxu0
      %v1595 = vadd.f32 0.0, %v1594
      %1596 = vmatprep.mubr.f32.mxu0 0.0
      %1597 = vmatmul.mubr.f32.gmra.mxu0 %v428
      %v1598 = vpop.f32.mrf.mxu0
      %v1599 = vadd.f32 0.0, %v1598
      %v1600 = vpop.f32.mrf.mxu0
      %v1601 = vadd.f32 0.0, %v1600
      %1602 = vmatprep.mubr.f32.mxu0 0.0
      %1603 = vmatmul.mubr.f32.gmra.mxu0 %v431
      %v1604 = vpop.f32.mrf.mxu0
      %v1605 = vadd.f32 0.0, %v1604
      %v1606 = vpop.f32.mrf.mxu0
      %v1607 = vadd.f32 0.0, %v1606
      %1608 = vmatprep.mubr.f32.mxu0 0.0
      %1609 = vmatmul.mubr.f32.gmra.mxu0 %v434
      %v1610 = vpop.f32.mrf.mxu0
      %v1611 = vadd.f32 0.0, %v1610
      %v1612 = vpop.f32.mrf.mxu0
      %v1613 = vadd.f32 0.0, %v1612
      %1614 = vmatprep.mubr.f32.mxu0 0.0
      %1615 = vmatmul.mubr.f32.gmra.mxu0 %v437
      %v1616 = vpop.f32.mrf.mxu0
      %v1617 = vadd.f32 0.0, %v1616
      %v1618 = vpop.f32.mrf.mxu0
      %v1619 = vadd.f32 0.0, %v1618
      %1620 = vmatprep.mubr.f32.mxu0 0.0
      %1621 = vmatmul.mubr.f32.gmra.mxu0 %v440
      %v1622 = vpop.f32.mrf.mxu0
      %v1623 = vadd.f32 0.0, %v1622
      %v1624 = vpop.f32.mrf.mxu0
      %v1625 = vadd.f32 0.0, %v1624
      %1626 = vmatprep.mubr.f32.mxu0 0.0
      %1627 = vmatmul.mubr.f32.gmra.mxu0 %v443
      %v1628 = vpop.f32.mrf.mxu0
      %v1629 = vadd.f32 0.0, %v1628
      %v1630 = vpop.f32.mrf.mxu0
      %v1631 = vadd.f32 0.0, %v1630
      %1632 = vmatprep.mubr.f32.mxu0 0.0
      %1633 = vmatmul.mubr.f32.gmra.mxu0 %v446
      %v1634 = vpop.f32.mrf.mxu0
      %v1635 = vadd.f32 0.0, %v1634
      %v1636 = vpop.f32.mrf.mxu0
      %v1637 = vadd.f32 0.0, %v1636
      %1638 = vmatprep.mubr.f32.mxu0 0.0
      %1639 = vmatmul.mubr.f32.gmra.mxu0 %v449
      %v1640 = vpop.f32.mrf.mxu0
      %v1641 = vadd.f32 0.0, %v1640
      %v1642 = vpop.f32.mrf.mxu0
      %v1643 = vadd.f32 0.0, %v1642
      %1644 = vmatprep.mubr.f32.mxu0 0.0
      %1645 = vmatmul.mubr.f32.gmra.mxu0 %v452
      %v1646 = vpop.f32.mrf.mxu0
      %v1647 = vadd.f32 0.0, %v1646
      %v1648 = vpop.f32.mrf.mxu0
      %v1649 = vadd.f32 0.0, %v1648
      %1650 = vmatprep.mubr.f32.mxu0 0.0
      %1651 = vmatmul.mubr.f32.gmra.mxu0 %v455
      %v1652 = vpop.f32.mrf.mxu0
      %v1653 = vadd.f32 0.0, %v1652
      %v1654 = vpop.f32.mrf.mxu0
      %v1655 = vadd.f32 0.0, %v1654
      %1656 = vmatprep.mubr.f32.mxu0 0.0
      %1657 = vmatmul.mubr.f32.gmra.mxu0 %v458
      %v1658 = vpop.f32.mrf.mxu0
      %v1659 = vadd.f32 0.0, %v1658
      %v1660 = vpop.f32.mrf.mxu0
      %v1661 = vadd.f32 0.0, %v1660
      %1662 = vmatprep.mubr.f32.mxu0 0.0
      %1663 = vmatmul.mubr.f32.gmra.mxu0 %v461
      %v1664 = vpop.f32.mrf.mxu0
      %v1665 = vadd.f32 0.0, %v1664
      %v1666 = vpop.f32.mrf.mxu0
      %v1667 = vadd.f32 0.0, %v1666
      %1668 = vmatprep.mubr.f32.mxu0 0.0
      %1669 = vmatmul.mubr.f32.gmra.mxu0 %v464
      %v1670 = vpop.f32.mrf.mxu0
      %v1671 = vadd.f32 0.0, %v1670
      %v1672 = vpop.f32.mrf.mxu0
      %v1673 = vadd.f32 0.0, %v1672
      %1674 = vmatprep.mubr.f32.mxu0 0.0
      %1675 = vmatmul.mubr.f32.gmra.mxu0 %v467
      %v1676 = vpop.f32.mrf.mxu0
      %v1677 = vadd.f32 0.0, %v1676
      %v1678 = vpop.f32.mrf.mxu0
      %v1679 = vadd.f32 0.0, %v1678
      %1680 = vmatprep.mubr.f32.mxu0 0.0
      %1681 = vmatmul.mubr.f32.gmra.mxu0 %v470
      %v1682 = vpop.f32.mrf.mxu0
      %v1683 = vadd.f32 0.0, %v1682
      %v1684 = vpop.f32.mrf.mxu0
      %v1685 = vadd.f32 0.0, %v1684
      %1686 = vmatprep.mubr.f32.mxu0 0.0
      %1687 = vmatmul.mubr.f32.gmra.mxu0 %v473
      %v1688 = vpop.f32.mrf.mxu0
      %v1689 = vadd.f32 0.0, %v1688
      %v1690 = vpop.f32.mrf.mxu0
      %v1691 = vadd.f32 0.0, %v1690
      %1692 = vmatprep.mubr.f32.mxu0 0.0
      %1693 = vmatmul.mubr.f32.gmra.mxu0 %v476
      %v1694 = vpop.f32.mrf.mxu0
      %v1695 = vadd.f32 0.0, %v1694
      %v1696 = vpop.f32.mrf.mxu0
      %v1697 = vadd.f32 0.0, %v1696
      %1698 = vmatprep.mubr.f32.mxu0 0.0
      %1699 = vmatmul.mubr.f32.gmra.mxu0 %v479
      %v1700 = vpop.f32.mrf.mxu0
      %v1701 = vadd.f32 0.0, %v1700
      %v1702 = vpop.f32.mrf.mxu0
      %v1703 = vadd.f32 0.0, %v1702
      %1704 = vmatprep.mubr.f32.mxu0 0.0
      %1705 = vmatmul.mubr.f32.gmra.mxu0 %v482
      %v1706 = vpop.f32.mrf.mxu0
      %v1707 = vadd.f32 0.0, %v1706
      %v1708 = vpop.f32.mrf.mxu0
      %v1709 = vadd.f32 0.0, %v1708
      %1710 = vmatprep.mubr.f32.mxu0 0.0
      %1711 = vmatmul.mubr.f32.gmra.mxu0 %v485
      %v1712 = vpop.f32.mrf.mxu0
      %v1713 = vadd.f32 0.0, %v1712
      %v1714 = vpop.f32.mrf.mxu0
      %v1715 = vadd.f32 0.0, %v1714
      %1716 = vmatprep.mubr.f32.mxu0 0.0
      %1717 = vmatmul.mubr.f32.gmra.mxu0 %v488
      %v1718 = vpop.f32.mrf.mxu0
      %v1719 = vadd.f32 0.0, %v1718
      %v1720 = vpop.f32.mrf.mxu0
      %v1721 = vadd.f32 0.0, %v1720
      %1722 = vmatprep.mubr.f32.mxu0 0.0
      %1723 = vmatmul.mubr.f32.gmra.mxu0 %v491
      %v1724 = vpop.f32.mrf.mxu0
      %v1725 = vadd.f32 0.0, %v1724
      %v1726 = vpop.f32.mrf.mxu0
      %v1727 = vadd.f32 0.0, %v1726
      %1728 = vmatprep.mubr.f32.mxu0 0.0
      %1729 = vmatmul.mubr.f32.gmra.mxu0 %v494
      %v1730 = vpop.f32.mrf.mxu0
      %v1731 = vadd.f32 0.0, %v1730
      %v1732 = vpop.f32.mrf.mxu0
      %v1733 = vadd.f32 0.0, %v1732
      %1734 = vmatprep.mubr.f32.mxu0 0.0
      %1735 = vmatmul.mubr.f32.gmra.mxu0 %v497
      %v1736 = vpop.f32.mrf.mxu0
      %v1737 = vadd.f32 0.0, %v1736
      %v1738 = vpop.f32.mrf.mxu0
      %v1739 = vadd.f32 0.0, %v1738
      %1740 = vmatprep.mubr.f32.mxu0 0.0
      %1741 = vmatmul.mubr.f32.gmra.mxu0 %v500
      %v1742 = vpop.f32.mrf.mxu0
      %v1743 = vadd.f32 0.0, %v1742
      %v1744 = vpop.f32.mrf.mxu0
      %v1745 = vadd.f32 0.0, %v1744
      %1746 = vmatprep.mubr.f32.mxu0 0.0
      %1747 = vmatmul.mubr.f32.gmra.mxu0 %v503
      %v1748 = vpop.f32.mrf.mxu0
      %v1749 = vadd.f32 0.0, %v1748
      %v1750 = vpop.f32.mrf.mxu0
      %v1751 = vadd.f32 0.0, %v1750
      %1752 = vmatprep.mubr.f32.mxu0 0.0
      %1753 = vmatmul.mubr.f32.gmra.mxu0 %v506
      %v1754 = vpop.f32.mrf.mxu0
      %v1755 = vadd.f32 0.0, %v1754
      %v1756 = vpop.f32.mrf.mxu0
      %v1757 = vadd.f32 0.0, %v1756
      %1758 = vmatprep.mubr.f32.mxu0 0.0
      %1759 = vmatmul.mubr.f32.gmra.mxu0 %v509
      %v1760 = vpop.f32.mrf.mxu0
      %v1761 = vadd.f32 0.0, %v1760
      %v1762 = vpop.f32.mrf.mxu0
      %v1763 = vadd.f32 0.0, %v1762
      %1764 = vmatprep.mubr.f32.mxu0 0.0
      %1765 = vmatmul.mubr.f32.gmra.mxu0 %v512
      %v1766 = vpop.f32.mrf.mxu0
      %v1767 = vadd.f32 0.0, %v1766
      %v1768 = vpop.f32.mrf.mxu0
      %v1769 = vadd.f32 0.0, %v1768
      %1770 = vmatprep.mubr.f32.mxu0 0.0
      %1771 = vmatmul.mubr.f32.gmra.mxu0 %v515
      %v1772 = vpop.f32.mrf.mxu0
      %v1773 = vadd.f32 0.0, %v1772
      %v1774 = vpop.f32.mrf.mxu0
      %v1775 = vadd.f32 0.0, %v1774
      %1776 = vmatprep.mubr.f32.mxu0 0.0
      %1777 = vmatmul.mubr.f32.gmra.mxu0 %v518
      %v1778 = vpop.f32.mrf.mxu0
      %v1779 = vadd.f32 0.0, %v1778
      %v1780 = vpop.f32.mrf.mxu0
      %v1781 = vadd.f32 0.0, %v1780
      %1782 = vmatprep.mubr.f32.mxu0 0.0
      %1783 = vmatmul.mubr.f32.gmra.mxu0 %v521
      %v1784 = vpop.f32.mrf.mxu0
      %v1785 = vadd.f32 0.0, %v1784
      %v1786 = vpop.f32.mrf.mxu0
      %v1787 = vadd.f32 0.0, %v1786
      %1788 = vmatprep.mubr.f32.mxu0 0.0
      %1789 = vmatmul.mubr.f32.gmra.mxu0 %v524
      %v1790 = vpop.f32.mrf.mxu0
      %v1791 = vadd.f32 0.0, %v1790
      %v1792 = vpop.f32.mrf.mxu0
      %v1793 = vadd.f32 0.0, %v1792
      %1794 = vmatprep.mubr.f32.mxu0 0.0
      %1795 = vmatmul.mubr.f32.gmra.mxu0 %v527
      %v1796 = vpop.f32.mrf.mxu0
      %v1797 = vadd.f32 0.0, %v1796
      %v1798 = vpop.f32.mrf.mxu0
      %v1799 = vadd.f32 0.0, %v1798
      %1800 = vmatprep.mubr.f32.mxu0 0.0
      %1801 = vmatmul.mubr.f32.gmra.mxu0 %v530
      %v1802 = vpop.f32.mrf.mxu0
      %v1803 = vadd.f32 0.0, %v1802
      %v1804 = vpop.f32.mrf.mxu0
      %v1805 = vadd.f32 0.0, %v1804
      %1806 = vmatprep.mubr.f32.mxu0 0.0
      %1807 = vmatmul.mubr.f32.gmra.mxu0 %v533
      %v1808 = vpop.f32.mrf.mxu0
      %v1809 = vadd.f32 0.0, %v1808
      %v1810 = vpop.f32.mrf.mxu0
      %v1811 = vadd.f32 0.0, %v1810
      %1812 = vmatprep.mubr.f32.mxu0 0.0
      %1813 = vmatmul.mubr.f32.gmra.mxu0 %v536
      %v1814 = vpop.f32.mrf.mxu0
      %v1815 = vadd.f32 0.0, %v1814
      %v1816 = vpop.f32.mrf.mxu0
      %v1817 = vadd.f32 0.0, %v1816
      %1818 = vmatprep.mubr.f32.mxu0 0.0
      %1819 = vmatmul.mubr.f32.gmra.mxu0 %v539
      %v1820 = vpop.f32.mrf.mxu0
      %v1821 = vadd.f32 0.0, %v1820
      %v1822 = vpop.f32.mrf.mxu0
      %v1823 = vadd.f32 0.0, %v1822
      %1824 = vmatprep.mubr.f32.mxu0 0.0
      %1825 = vmatmul.mubr.f32.gmra.mxu0 %v542
      %v1826 = vpop.f32.mrf.mxu0
      %v1827 = vadd.f32 0.0, %v1826
      %v1828 = vpop.f32.mrf.mxu0
      %v1829 = vadd.f32 0.0, %v1828
      %1830 = vmatprep.mubr.f32.mxu0 0.0
      %1831 = vmatmul.mubr.f32.gmra.mxu0 %v545
      %v1832 = vpop.f32.mrf.mxu0
      %v1833 = vadd.f32 0.0, %v1832
      %v1834 = vpop.f32.mrf.mxu0
      %v1835 = vadd.f32 0.0, %v1834
      %1836 = vmatprep.mubr.f32.mxu0 0.0
      %1837 = vmatmul.mubr.f32.gmra.mxu0 %v548
      %v1838 = vpop.f32.mrf.mxu0
      %v1839 = vadd.f32 0.0, %v1838
      %v1840 = vpop.f32.mrf.mxu0
      %v1841 = vadd.f32 0.0, %v1840
      %1842 = vmatprep.mubr.f32.mxu0 0.0
      %1843 = vmatmul.mubr.f32.gmra.mxu0 %v551
      %v1844 = vpop.f32.mrf.mxu0
      %v1845 = vadd.f32 0.0, %v1844
      %v1846 = vpop.f32.mrf.mxu0
      %v1847 = vadd.f32 0.0, %v1846
      %1848 = vmatprep.mubr.f32.mxu0 0.0
      %1849 = vmatmul.mubr.f32.gmra.mxu0 %v554
      %v1850 = vpop.f32.mrf.mxu0
      %v1851 = vadd.f32 0.0, %v1850
      %v1852 = vpop.f32.mrf.mxu0
      %v1853 = vadd.f32 0.0, %v1852
      %1854 = vmatprep.mubr.f32.mxu0 0.0
      %1855 = vmatmul.mubr.f32.gmra.mxu0 %v557
      %v1856 = vpop.f32.mrf.mxu0
      %v1857 = vadd.f32 0.0, %v1856
      %v1858 = vpop.f32.mrf.mxu0
      %v1859 = vadd.f32 0.0, %v1858
      %1860 = vmatprep.mubr.f32.mxu0 0.0
      %1861 = vmatmul.mubr.f32.gmra.mxu0 %v560
      %v1862 = vpop.f32.mrf.mxu0
      %v1863 = vadd.f32 0.0, %v1862
      %v1864 = vpop.f32.mrf.mxu0
      %v1865 = vadd.f32 0.0, %v1864
      %1866 = vmatprep.mubr.f32.mxu0 0.0
      %1867 = vmatmul.mubr.f32.gmra.mxu0 %v563
      %v1868 = vpop.f32.mrf.mxu0
      %v1869 = vadd.f32 0.0, %v1868
      %v1870 = vpop.f32.mrf.mxu0
      %v1871 = vadd.f32 0.0, %v1870
      %1872 = vmatprep.mubr.f32.mxu0 0.0
      %1873 = vmatmul.mubr.f32.gmra.mxu0 %v566
      %v1874 = vpop.f32.mrf.mxu0
      %v1875 = vadd.f32 0.0, %v1874
      %v1876 = vpop.f32.mrf.mxu0
      %v1877 = vadd.f32 0.0, %v1876
      %1878 = vmatprep.mubr.f32.mxu0 0.0
      %1879 = vmatmul.mubr.f32.gmra.mxu0 %v569
      %v1880 = vpop.f32.mrf.mxu0
      %v1881 = vadd.f32 0.0, %v1880
      %v1882 = vpop.f32.mrf.mxu0
      %v1883 = vadd.f32 0.0, %v1882
      %1884 = vmatprep.mubr.f32.mxu0 0.0
      %1885 = vmatmul.mubr.f32.gmra.mxu0 %v572
      %v1886 = vpop.f32.mrf.mxu0
      %v1887 = vadd.f32 0.0, %v1886
      %v1888 = vpop.f32.mrf.mxu0
      %v1889 = vadd.f32 0.0, %v1888
      %1890 = vmatprep.mubr.f32.mxu0 0.0
      %1891 = vmatmul.mubr.f32.gmra.mxu0 %v575
      %v1892 = vpop.f32.mrf.mxu0
      %v1893 = vadd.f32 0.0, %v1892
      %v1894 = vpop.f32.mrf.mxu0
      %v1895 = vadd.f32 0.0, %v1894
      %1896 = vmatprep.mubr.f32.mxu0 0.0
      %1897 = vmatmul.mubr.f32.gmra.mxu0 %v578
      %v1898 = vpop.f32.mrf.mxu0
      %v1899 = vadd.f32 0.0, %v1898
      %v1900 = vpop.f32.mrf.mxu0
      %v1901 = vadd.f32 0.0, %v1900
      %1902 = vmatprep.mubr.f32.mxu0 0.0
      %1903 = vmatmul.mubr.f32.gmra.mxu0 %v581
      %v1904 = vpop.f32.mrf.mxu0
      %v1905 = vadd.f32 0.0, %v1904
      %v1906 = vpop.f32.mrf.mxu0
      %v1907 = vadd.f32 0.0, %v1906
      %1908 = vmatprep.mubr.f32.mxu0 0.0
      %1909 = vmatmul.mubr.f32.gmra.mxu0 %v584
      %v1910 = vpop.f32.mrf.mxu0
      %v1911 = vadd.f32 0.0, %v1910
      %v1912 = vpop.f32.mrf.mxu0
      %v1913 = vadd.f32 0.0, %v1912
      %1914 = vmatprep.mubr.f32.mxu0 0.0
      %1915 = vmatmul.mubr.f32.gmra.mxu0 %v587
      %v1916 = vpop.f32.mrf.mxu0
      %v1917 = vadd.f32 0.0, %v1916
      %v1918 = vpop.f32.mrf.mxu0
      %v1919 = vadd.f32 0.0, %v1918
      %1920 = vmatprep.mubr.f32.mxu0 0.0
      %1921 = vmatmul.mubr.f32.gmra.mxu0 %v590
      %v1922 = vpop.f32.mrf.mxu0
      %v1923 = vadd.f32 0.0, %v1922
      %v1924 = vpop.f32.mrf.mxu0
      %v1925 = vadd.f32 0.0, %v1924
      %1926 = vmatprep.mubr.f32.mxu0 0.0
      %1927 = vmatmul.mubr.f32.gmra.mxu0 %v593
      %v1928 = vpop.f32.mrf.mxu0
      %v1929 = vadd.f32 0.0, %v1928
      %v1930 = vpop.f32.mrf.mxu0
      %v1931 = vadd.f32 0.0, %v1930
      %1932 = vmatprep.mubr.f32.mxu0 0.0
      %1933 = vmatmul.mubr.f32.gmra.mxu0 %v596
      %v1934 = vpop.f32.mrf.mxu0
      %v1935 = vadd.f32 0.0, %v1934
      %v1936 = vpop.f32.mrf.mxu0
      %v1937 = vadd.f32 0.0, %v1936
      %1938 = vmatprep.mubr.f32.mxu0 0.0
      %1939 = vmatmul.mubr.f32.gmra.mxu0 %v599
      %v1940 = vpop.f32.mrf.mxu0
      %v1941 = vadd.f32 0.0, %v1940
      %v1942 = vpop.f32.mrf.mxu0
      %v1943 = vadd.f32 0.0, %v1942
      %1944 = vmatprep.mubr.f32.mxu0 0.0
      %1945 = vmatmul.mubr.f32.gmra.mxu0 %v602
      %v1946 = vpop.f32.mrf.mxu0
      %v1947 = vadd.f32 0.0, %v1946
      %v1948 = vpop.f32.mrf.mxu0
      %v1949 = vadd.f32 0.0, %v1948
      %1950 = vdwg.mxu0
      %1951 = vmatprep.subr.mxu0 0.0
      %1952 = vmatpush1.msra.mxu0 0.0
      %1953 = vmatprep.subr.mxu0 0.0
      %1954 = vmatpush1.msra.mxu0 0.0
      %1955 = vmatprep.subr.mxu0 0.0
      %1956 = vmatpush1.msra.mxu0 0.0
      %1957 = vmatprep.subr.mxu0 0.0
      %1958 = vmatpush1.msra.mxu0 0.0
      %1959 = vmatprep.subr.mxu0 0.0
      %1960 = vmatpush1.msra.mxu0 0.0
      %1961 = vmatprep.subr.mxu0 0.0
      %1962 = vmatpush1.msra.mxu0 0.0
      %1963 = vmatprep.subr.mxu0 0.0
      %1964 = vmatpush1.msra.mxu0 0.0
      %1965 = vmatprep.subr.mxu0 0.0
      %1966 = vmatpush1.msra.mxu0 0.0
      %1967 = vmatprep.subr.mxu0 0.0
      %1968 = vmatpush1.msra.mxu0 0.0
      %1969 = vmatprep.subr.mxu0 0.0
      %1970 = vmatpush1.msra.mxu0 0.0
      %1971 = vmatprep.subr.mxu0 0.0
      %1972 = vmatpush1.msra.mxu0 0.0
      %1973 = vmatprep.subr.mxu0 0.0
      %1974 = vmatpush1.msra.mxu0 0.0
      %1975 = vmatprep.subr.mxu0 0.0
      %1976 = vmatpush1.msra.mxu0 0.0
      %1977 = vmatprep.subr.mxu0 0.0
      %1978 = vmatpush1.msra.mxu0 %v410
      %1979 = vmatprep.subr.mxu0 0.0
      %1980 = vmatpush1.msra.mxu0 %v403
      %1981 = vmatprep.subr.mxu0 0.0
      %1982 = vmatpush1.msra.mxu0 %v396
      %1983 = vmatprep.subr.mxu0 0.0
      %1984 = vmatpush2.msra.mxu0 0.0
      %1985 = vmatprep.subr.mxu0 0.0
      %1986 = vmatpush2.msra.mxu0 0.0
      %1987 = vmatprep.subr.mxu0 0.0
      %1988 = vmatpush2.msra.mxu0 0.0
      %1989 = vmatprep.subr.mxu0 0.0
      %1990 = vmatpush2.msra.mxu0 0.0
      %1991 = vmatprep.subr.mxu0 0.0
      %1992 = vmatpush2.msra.mxu0 0.0
      %1993 = vmatprep.subr.mxu0 0.0
      %1994 = vmatpush2.msra.mxu0 0.0
      %1995 = vmatprep.subr.mxu0 0.0
      %1996 = vmatpush2.msra.mxu0 0.0
      %1997 = vmatprep.subr.mxu0 0.0
      %1998 = vmatpush2.msra.mxu0 0.0
      %1999 = vmatprep.subr.mxu0 0.0
      %2000 = vmatpush2.msra.mxu0 0.0
      %2001 = vmatprep.subr.mxu0 0.0
      %2002 = vmatpush2.msra.mxu0 0.0
      %2003 = vmatprep.subr.mxu0 0.0
      %2004 = vmatpush2.msra.mxu0 0.0
      %2005 = vmatprep.subr.mxu0 0.0
      %2006 = vmatpush2.msra.mxu0 0.0
      %2007 = vmatprep.subr.mxu0 0.0
      %2008 = vmatpush2.msra.mxu0 0.0
      %2009 = vmatprep.subr.mxu0 0.0
      %2010 = vmatpush2.msra.mxu0 0.0
      %2011 = vmatprep.subr.mxu0 0.0
      %2012 = vmatpush2.msra.mxu0 0.0
      %2013 = vmatprep.subr.mxu0 0.0
      %2014 = vmatpush2.msra.mxu0 0.0
      %2015 = vmatprep.mubr.f32.mxu0 0.0
      %2016 = vmatmul.mubr.f32.gmra.mxu0 %v413
      %v2017 = vpop.f32.mrf.mxu0
      %v2018 = vadd.f32 0.0, %v2017
      %v2019 = vpop.f32.mrf.mxu0
      %2020 = vmatprep.mubr.f32.mxu0 0.0
      %2021 = vmatmul.mubr.f32.gmra.mxu0 %v416
      %v2022 = vpop.f32.mrf.mxu0
      %v2023 = vadd.f32 0.0, %v2022
      %v2024 = vpop.f32.mrf.mxu0
      %2025 = vmatprep.mubr.f32.mxu0 0.0
      %2026 = vmatmul.mubr.f32.gmra.mxu0 %v419
      %v2027 = vpop.f32.mrf.mxu0
      %v2028 = vadd.f32 0.0, %v2027
      %v2029 = vpop.f32.mrf.mxu0
      %2030 = vmatprep.mubr.f32.mxu0 0.0
      %2031 = vmatmul.mubr.f32.gmra.mxu0 %v422
      %v2032 = vpop.f32.mrf.mxu0
      %v2033 = vadd.f32 0.0, %v2032
      %v2034 = vpop.f32.mrf.mxu0
      %2035 = vmatprep.mubr.f32.mxu0 0.0
      %2036 = vmatmul.mubr.f32.gmra.mxu0 %v425
      %v2037 = vpop.f32.mrf.mxu0
      %v2038 = vadd.f32 0.0, %v2037
      %v2039 = vpop.f32.mrf.mxu0
      %2040 = vmatprep.mubr.f32.mxu0 0.0
      %2041 = vmatmul.mubr.f32.gmra.mxu0 %v428
      %v2042 = vpop.f32.mrf.mxu0
      %v2043 = vadd.f32 0.0, %v2042
      %v2044 = vpop.f32.mrf.mxu0
      %2045 = vmatprep.mubr.f32.mxu0 0.0
      %2046 = vmatmul.mubr.f32.gmra.mxu0 %v431
      %v2047 = vpop.f32.mrf.mxu0
      %v2048 = vadd.f32 0.0, %v2047
      %v2049 = vpop.f32.mrf.mxu0
      %2050 = vmatprep.mubr.f32.mxu0 0.0
      %2051 = vmatmul.mubr.f32.gmra.mxu0 %v434
      %v2052 = vpop.f32.mrf.mxu0
      %v2053 = vadd.f32 0.0, %v2052
      %v2054 = vpop.f32.mrf.mxu0
      %2055 = vmatprep.mubr.f32.mxu0 0.0
      %2056 = vmatmul.mubr.f32.gmra.mxu0 %v437
      %v2057 = vpop.f32.mrf.mxu0
      %v2058 = vadd.f32 0.0, %v2057
      %v2059 = vpop.f32.mrf.mxu0
      %2060 = vmatprep.mubr.f32.mxu0 0.0
      %2061 = vmatmul.mubr.f32.gmra.mxu0 %v440
      %v2062 = vpop.f32.mrf.mxu0
      %v2063 = vadd.f32 0.0, %v2062
      %v2064 = vpop.f32.mrf.mxu0
      %2065 = vmatprep.mubr.f32.mxu0 0.0
      %2066 = vmatmul.mubr.f32.gmra.mxu0 %v443
      %v2067 = vpop.f32.mrf.mxu0
      %v2068 = vadd.f32 0.0, %v2067
      %v2069 = vpop.f32.mrf.mxu0
      %2070 = vmatprep.mubr.f32.mxu0 0.0
      %2071 = vmatmul.mubr.f32.gmra.mxu0 %v446
      %v2072 = vpop.f32.mrf.mxu0
      %v2073 = vadd.f32 0.0, %v2072
      %v2074 = vpop.f32.mrf.mxu0
      %2075 = vmatprep.mubr.f32.mxu0 0.0
      %2076 = vmatmul.mubr.f32.gmra.mxu0 %v449
      %v2077 = vpop.f32.mrf.mxu0
      %v2078 = vadd.f32 0.0, %v2077
      %v2079 = vpop.f32.mrf.mxu0
      %2080 = vmatprep.mubr.f32.mxu0 0.0
      %2081 = vmatmul.mubr.f32.gmra.mxu0 %v452
      %v2082 = vpop.f32.mrf.mxu0
      %v2083 = vadd.f32 0.0, %v2082
      %v2084 = vpop.f32.mrf.mxu0
      %2085 = vmatprep.mubr.f32.mxu0 0.0
      %2086 = vmatmul.mubr.f32.gmra.mxu0 %v455
      %v2087 = vpop.f32.mrf.mxu0
      %v2088 = vadd.f32 0.0, %v2087
      %v2089 = vpop.f32.mrf.mxu0
      %2090 = vmatprep.mubr.f32.mxu0 0.0
      %2091 = vmatmul.mubr.f32.gmra.mxu0 %v458
      %v2092 = vpop.f32.mrf.mxu0
      %v2093 = vadd.f32 0.0, %v2092
      %v2094 = vpop.f32.mrf.mxu0
      %2095 = vmatprep.mubr.f32.mxu0 0.0
      %2096 = vmatmul.mubr.f32.gmra.mxu0 %v461
      %v2097 = vpop.f32.mrf.mxu0
      %v2098 = vadd.f32 0.0, %v2097
      %v2099 = vpop.f32.mrf.mxu0
      %2100 = vmatprep.mubr.f32.mxu0 0.0
      %2101 = vmatmul.mubr.f32.gmra.mxu0 %v464
      %v2102 = vpop.f32.mrf.mxu0
      %v2103 = vadd.f32 0.0, %v2102
      %v2104 = vpop.f32.mrf.mxu0
      %2105 = vmatprep.mubr.f32.mxu0 0.0
      %2106 = vmatmul.mubr.f32.gmra.mxu0 %v467
      %v2107 = vpop.f32.mrf.mxu0
      %v2108 = vadd.f32 0.0, %v2107
      %v2109 = vpop.f32.mrf.mxu0
      %2110 = vmatprep.mubr.f32.mxu0 0.0
      %2111 = vmatmul.mubr.f32.gmra.mxu0 %v470
      %v2112 = vpop.f32.mrf.mxu0
      %v2113 = vadd.f32 0.0, %v2112
      %v2114 = vpop.f32.mrf.mxu0
      %2115 = vmatprep.mubr.f32.mxu0 0.0
      %2116 = vmatmul.mubr.f32.gmra.mxu0 %v473
      %v2117 = vpop.f32.mrf.mxu0
      %v2118 = vadd.f32 0.0, %v2117
      %v2119 = vpop.f32.mrf.mxu0
      %2120 = vmatprep.mubr.f32.mxu0 0.0
      %2121 = vmatmul.mubr.f32.gmra.mxu0 %v476
      %v2122 = vpop.f32.mrf.mxu0
      %v2123 = vadd.f32 0.0, %v2122
      %v2124 = vpop.f32.mrf.mxu0
      %2125 = vmatprep.mubr.f32.mxu0 0.0
      %2126 = vmatmul.mubr.f32.gmra.mxu0 %v479
      %v2127 = vpop.f32.mrf.mxu0
      %v2128 = vadd.f32 0.0, %v2127
      %v2129 = vpop.f32.mrf.mxu0
      %2130 = vmatprep.mubr.f32.mxu0 0.0
      %2131 = vmatmul.mubr.f32.gmra.mxu0 %v482
      %v2132 = vpop.f32.mrf.mxu0
      %v2133 = vadd.f32 0.0, %v2132
      %v2134 = vpop.f32.mrf.mxu0
      %2135 = vmatprep.mubr.f32.mxu0 0.0
      %2136 = vmatmul.mubr.f32.gmra.mxu0 %v485
      %v2137 = vpop.f32.mrf.mxu0
      %v2138 = vadd.f32 0.0, %v2137
      %v2139 = vpop.f32.mrf.mxu0
      %2140 = vmatprep.mubr.f32.mxu0 0.0
      %2141 = vmatmul.mubr.f32.gmra.mxu0 %v488
      %v2142 = vpop.f32.mrf.mxu0
      %v2143 = vadd.f32 0.0, %v2142
      %v2144 = vpop.f32.mrf.mxu0
      %2145 = vmatprep.mubr.f32.mxu0 0.0
      %2146 = vmatmul.mubr.f32.gmra.mxu0 %v491
      %v2147 = vpop.f32.mrf.mxu0
      %v2148 = vadd.f32 0.0, %v2147
      %v2149 = vpop.f32.mrf.mxu0
      %2150 = vmatprep.mubr.f32.mxu0 0.0
      %2151 = vmatmul.mubr.f32.gmra.mxu0 %v494
      %v2152 = vpop.f32.mrf.mxu0
      %v2153 = vadd.f32 0.0, %v2152
      %v2154 = vpop.f32.mrf.mxu0
      %2155 = vmatprep.mubr.f32.mxu0 0.0
      %2156 = vmatmul.mubr.f32.gmra.mxu0 %v497
      %v2157 = vpop.f32.mrf.mxu0
      %v2158 = vadd.f32 0.0, %v2157
      %v2159 = vpop.f32.mrf.mxu0
      %2160 = vmatprep.mubr.f32.mxu0 0.0
      %2161 = vmatmul.mubr.f32.gmra.mxu0 %v500
      %v2162 = vpop.f32.mrf.mxu0
      %v2163 = vadd.f32 0.0, %v2162
      %v2164 = vpop.f32.mrf.mxu0
      %2165 = vmatprep.mubr.f32.mxu0 0.0
      %2166 = vmatmul.mubr.f32.gmra.mxu0 %v503
      %v2167 = vpop.f32.mrf.mxu0
      %v2168 = vadd.f32 0.0, %v2167
      %v2169 = vpop.f32.mrf.mxu0
      %2170 = vmatprep.mubr.f32.mxu0 0.0
      %2171 = vmatmul.mubr.f32.gmra.mxu0 %v506
      %v2172 = vpop.f32.mrf.mxu0
      %v2173 = vadd.f32 0.0, %v2172
      %v2174 = vpop.f32.mrf.mxu0
      %2175 = vmatprep.mubr.f32.mxu0 0.0
      %2176 = vmatmul.mubr.f32.gmra.mxu0 %v509
      %v2177 = vpop.f32.mrf.mxu0
      %v2178 = vadd.f32 0.0, %v2177
      %v2179 = vpop.f32.mrf.mxu0
      %2180 = vmatprep.mubr.f32.mxu0 0.0
      %2181 = vmatmul.mubr.f32.gmra.mxu0 %v512
      %v2182 = vpop.f32.mrf.mxu0
      %v2183 = vadd.f32 0.0, %v2182
      %v2184 = vpop.f32.mrf.mxu0
      %2185 = vmatprep.mubr.f32.mxu0 0.0
      %2186 = vmatmul.mubr.f32.gmra.mxu0 %v515
      %v2187 = vpop.f32.mrf.mxu0
      %v2188 = vadd.f32 0.0, %v2187
      %v2189 = vpop.f32.mrf.mxu0
      %2190 = vmatprep.mubr.f32.mxu0 0.0
      %2191 = vmatmul.mubr.f32.gmra.mxu0 %v518
      %v2192 = vpop.f32.mrf.mxu0
      %v2193 = vadd.f32 0.0, %v2192
      %v2194 = vpop.f32.mrf.mxu0
      %2195 = vmatprep.mubr.f32.mxu0 0.0
      %2196 = vmatmul.mubr.f32.gmra.mxu0 %v521
      %v2197 = vpop.f32.mrf.mxu0
      %v2198 = vadd.f32 0.0, %v2197
      %v2199 = vpop.f32.mrf.mxu0
      %2200 = vmatprep.mubr.f32.mxu0 0.0
      %2201 = vmatmul.mubr.f32.gmra.mxu0 %v524
      %v2202 = vpop.f32.mrf.mxu0
      %v2203 = vadd.f32 0.0, %v2202
      %v2204 = vpop.f32.mrf.mxu0
      %2205 = vmatprep.mubr.f32.mxu0 0.0
      %2206 = vmatmul.mubr.f32.gmra.mxu0 %v527
      %v2207 = vpop.f32.mrf.mxu0
      %v2208 = vadd.f32 0.0, %v2207
      %v2209 = vpop.f32.mrf.mxu0
      %2210 = vmatprep.mubr.f32.mxu0 0.0
      %2211 = vmatmul.mubr.f32.gmra.mxu0 %v530
      %v2212 = vpop.f32.mrf.mxu0
      %v2213 = vadd.f32 0.0, %v2212
      %v2214 = vpop.f32.mrf.mxu0
      %2215 = vmatprep.mubr.f32.mxu0 0.0
      %2216 = vmatmul.mubr.f32.gmra.mxu0 %v533
      %v2217 = vpop.f32.mrf.mxu0
      %v2218 = vadd.f32 0.0, %v2217
      %v2219 = vpop.f32.mrf.mxu0
      %2220 = vmatprep.mubr.f32.mxu0 0.0
      %2221 = vmatmul.mubr.f32.gmra.mxu0 %v536
      %v2222 = vpop.f32.mrf.mxu0
      %v2223 = vadd.f32 0.0, %v2222
      %v2224 = vpop.f32.mrf.mxu0
      %2225 = vmatprep.mubr.f32.mxu0 0.0
      %2226 = vmatmul.mubr.f32.gmra.mxu0 %v539
      %v2227 = vpop.f32.mrf.mxu0
      %v2228 = vadd.f32 0.0, %v2227
      %v2229 = vpop.f32.mrf.mxu0
      %2230 = vmatprep.mubr.f32.mxu0 0.0
      %2231 = vmatmul.mubr.f32.gmra.mxu0 %v542
      %v2232 = vpop.f32.mrf.mxu0
      %v2233 = vadd.f32 0.0, %v2232
      %v2234 = vpop.f32.mrf.mxu0
      %2235 = vmatprep.mubr.f32.mxu0 0.0
      %2236 = vmatmul.mubr.f32.gmra.mxu0 %v545
      %v2237 = vpop.f32.mrf.mxu0
      %v2238 = vadd.f32 0.0, %v2237
      %v2239 = vpop.f32.mrf.mxu0
      %2240 = vmatprep.mubr.f32.mxu0 0.0
      %2241 = vmatmul.mubr.f32.gmra.mxu0 %v548
      %v2242 = vpop.f32.mrf.mxu0
      %v2243 = vadd.f32 0.0, %v2242
      %v2244 = vpop.f32.mrf.mxu0
      %2245 = vmatprep.mubr.f32.mxu0 0.0
      %2246 = vmatmul.mubr.f32.gmra.mxu0 %v551
      %v2247 = vpop.f32.mrf.mxu0
      %v2248 = vadd.f32 0.0, %v2247
      %v2249 = vpop.f32.mrf.mxu0
      %2250 = vmatprep.mubr.f32.mxu0 0.0
      %2251 = vmatmul.mubr.f32.gmra.mxu0 %v554
      %v2252 = vpop.f32.mrf.mxu0
      %v2253 = vadd.f32 0.0, %v2252
      %v2254 = vpop.f32.mrf.mxu0
      %2255 = vmatprep.mubr.f32.mxu0 0.0
      %2256 = vmatmul.mubr.f32.gmra.mxu0 %v557
      %v2257 = vpop.f32.mrf.mxu0
      %v2258 = vadd.f32 0.0, %v2257
      %v2259 = vpop.f32.mrf.mxu0
      %2260 = vmatprep.mubr.f32.mxu0 0.0
      %2261 = vmatmul.mubr.f32.gmra.mxu0 %v560
      %v2262 = vpop.f32.mrf.mxu0
      %v2263 = vadd.f32 0.0, %v2262
      %v2264 = vpop.f32.mrf.mxu0
      %2265 = vmatprep.mubr.f32.mxu0 0.0
      %2266 = vmatmul.mubr.f32.gmra.mxu0 %v563
      %v2267 = vpop.f32.mrf.mxu0
      %v2268 = vadd.f32 0.0, %v2267
      %v2269 = vpop.f32.mrf.mxu0
      %2270 = vmatprep.mubr.f32.mxu0 0.0
      %2271 = vmatmul.mubr.f32.gmra.mxu0 %v566
      %v2272 = vpop.f32.mrf.mxu0
      %v2273 = vadd.f32 0.0, %v2272
      %v2274 = vpop.f32.mrf.mxu0
      %2275 = vmatprep.mubr.f32.mxu0 0.0
      %2276 = vmatmul.mubr.f32.gmra.mxu0 %v569
      %v2277 = vpop.f32.mrf.mxu0
      %v2278 = vadd.f32 0.0, %v2277
      %v2279 = vpop.f32.mrf.mxu0
      %2280 = vmatprep.mubr.f32.mxu0 0.0
      %2281 = vmatmul.mubr.f32.gmra.mxu0 %v572
      %v2282 = vpop.f32.mrf.mxu0
      %v2283 = vadd.f32 0.0, %v2282
      %v2284 = vpop.f32.mrf.mxu0
      %2285 = vmatprep.mubr.f32.mxu0 0.0
      %2286 = vmatmul.mubr.f32.gmra.mxu0 %v575
      %v2287 = vpop.f32.mrf.mxu0
      %v2288 = vadd.f32 0.0, %v2287
      %v2289 = vpop.f32.mrf.mxu0
      %2290 = vmatprep.mubr.f32.mxu0 0.0
      %2291 = vmatmul.mubr.f32.gmra.mxu0 %v578
      %v2292 = vpop.f32.mrf.mxu0
      %v2293 = vadd.f32 0.0, %v2292
      %v2294 = vpop.f32.mrf.mxu0
      %2295 = vmatprep.mubr.f32.mxu0 0.0
      %2296 = vmatmul.mubr.f32.gmra.mxu0 %v581
      %v2297 = vpop.f32.mrf.mxu0
      %v2298 = vadd.f32 0.0, %v2297
      %v2299 = vpop.f32.mrf.mxu0
      %2300 = vmatprep.mubr.f32.mxu0 0.0
      %2301 = vmatmul.mubr.f32.gmra.mxu0 %v584
      %v2302 = vpop.f32.mrf.mxu0
      %v2303 = vadd.f32 0.0, %v2302
      %v2304 = vpop.f32.mrf.mxu0
      %2305 = vmatprep.mubr.f32.mxu0 0.0
      %2306 = vmatmul.mubr.f32.gmra.mxu0 %v587
      %v2307 = vpop.f32.mrf.mxu0
      %v2308 = vadd.f32 0.0, %v2307
      %v2309 = vpop.f32.mrf.mxu0
      %2310 = vmatprep.mubr.f32.mxu0 0.0
      %2311 = vmatmul.mubr.f32.gmra.mxu0 %v590
      %v2312 = vpop.f32.mrf.mxu0
      %v2313 = vadd.f32 0.0, %v2312
      %v2314 = vpop.f32.mrf.mxu0
      %2315 = vmatprep.mubr.f32.mxu0 0.0
      %2316 = vmatmul.mubr.f32.gmra.mxu0 %v593
      %v2317 = vpop.f32.mrf.mxu0
      %v2318 = vadd.f32 0.0, %v2317
      %v2319 = vpop.f32.mrf.mxu0
      %2320 = vmatprep.mubr.f32.mxu0 0.0
      %2321 = vmatmul.mubr.f32.gmra.mxu0 %v596
      %v2322 = vpop.f32.mrf.mxu0
      %v2323 = vadd.f32 0.0, %v2322
      %v2324 = vpop.f32.mrf.mxu0
      %2325 = vmatprep.mubr.f32.mxu0 0.0
      %2326 = vmatmul.mubr.f32.gmra.mxu0 %v599
      %v2327 = vpop.f32.mrf.mxu0
      %v2328 = vadd.f32 0.0, %v2327
      %v2329 = vpop.f32.mrf.mxu0
      %2330 = vmatprep.mubr.f32.mxu0 0.0
      %2331 = vmatmul.mubr.f32.gmra.mxu0 %v602
      %v2332 = vpop.f32.mrf.mxu0
      %v2333 = vadd.f32 0.0, %v2332
      %v2334 = vpop.f32.mrf.mxu0
      %2335 = vdwg.mxu0
      %2336 = vst [vmem:[%s196] sm:$0xff] %v671
      %2337 = vst [vmem:[%s196 + $0x8] sm:$0xff] %v673
      %2338 = vst [vmem:[%s196 + $0x10] sm:$0xff] %v1120
      %2339 = vst [vmem:[%s196 + $0x18] sm:$0xff] %v1122
      %2340 = vst [vmem:[%s196 + $0x20] sm:$0xff] %v1569
      %2341 = vst [vmem:[%s196 + $0x28] sm:$0xff] %v1571
      %vm2342 = vcmask 261120
      %2343 = vst.msk [vmem:[%s196 + $0x30] sm:$0xff] %vm2342, %v2018
      %2344 = vst [vmem:[%s196 + $0x38] sm:$0xff] %v677
      %2345 = vst [vmem:[%s196 + $0x40] sm:$0xff] %v679
      %2346 = vst [vmem:[%s196 + $0x48] sm:$0xff] %v1126
      %2347 = vst [vmem:[%s196 + $0x50] sm:$0xff] %v1128
      %2348 = vst [vmem:[%s196 + $0x58] sm:$0xff] %v1575
      %2349 = vst [vmem:[%s196 + $0x60] sm:$0xff] %v1577
      %2350 = vst.msk [vmem:[%s196 + $0x68] sm:$0xff] %vm2342, %v2023
      %2351 = vst [vmem:[%s196 + $0x70] sm:$0xff] %v683
      %2352 = vst [vmem:[%s196 + $0x78] sm:$0xff] %v685
      %2353 = vst [vmem:[%s196 + $0x80] sm:$0xff] %v1132
      %2354 = vst [vmem:[%s196 + $0x88] sm:$0xff] %v1134
      %2355 = vst [vmem:[%s196 + $0x90] sm:$0xff] %v1581
      %2356 = vst [vmem:[%s196 + $0x98] sm:$0xff] %v1583
      %2357 = vst.msk [vmem:[%s196 + $0xa0] sm:$0xff] %vm2342, %v2028
      %2358 = vst [vmem:[%s196 + $0xa8] sm:$0xff] %v689
      %2359 = vst [vmem:[%s196 + $0xb0] sm:$0xff] %v691
      %2360 = vst [vmem:[%s196 + $0xb8] sm:$0xff] %v1138
      %2361 = vst [vmem:[%s196 + $0xc0] sm:$0xff] %v1140
      %2362 = vst [vmem:[%s196 + $0xc8] sm:$0xff] %v1587
      %2363 = vst [vmem:[%s196 + $0xd0] sm:$0xff] %v1589
      %2364 = vst.msk [vmem:[%s196 + $0xd8] sm:$0xff] %vm2342, %v2033
      %2365 = vst [vmem:[%s196 + $0xe0] sm:$0xff] %v695
      %2366 = vst [vmem:[%s196 + $0xe8] sm:$0xff] %v697
      %2367 = vst [vmem:[%s196 + $0xf0] sm:$0xff] %v1144
      %2368 = vst [vmem:[%s196 + $0xf8] sm:$0xff] %v1146
      %2369 = vst [vmem:[%s196 + $0x100] sm:$0xff] %v1593
      %2370 = vst [vmem:[%s196 + $0x108] sm:$0xff] %v1595
      %2371 = vst.msk [vmem:[%s196 + $0x110] sm:$0xff] %vm2342, %v2038
      %2372 = vst [vmem:[%s196 + $0x118] sm:$0xff] %v701
      %2373 = vst [vmem:[%s196 + $0x120] sm:$0xff] %v703
      %2374 = vst [vmem:[%s196 + $0x128] sm:$0xff] %v1150
      %2375 = vst [vmem:[%s196 + $0x130] sm:$0xff] %v1152
      %2376 = vst [vmem:[%s196 + $0x138] sm:$0xff] %v1599
      %2377 = vst [vmem:[%s196 + $0x140] sm:$0xff] %v1601
      %2378 = vst.msk [vmem:[%s196 + $0x148] sm:$0xff] %vm2342, %v2043
      %2379 = vst [vmem:[%s196 + $0x150] sm:$0xff] %v707
      %2380 = vst [vmem:[%s196 + $0x158] sm:$0xff] %v709
      %2381 = vst [vmem:[%s196 + $0x160] sm:$0xff] %v1156
      %2382 = vst [vmem:[%s196 + $0x168] sm:$0xff] %v1158
      %2383 = vst [vmem:[%s196 + $0x170] sm:$0xff] %v1605
      %2384 = vst [vmem:[%s196 + $0x178] sm:$0xff] %v1607
      %2385 = vst.msk [vmem:[%s196 + $0x180] sm:$0xff] %vm2342, %v2048
      %2386 = vst [vmem:[%s196 + $0x188] sm:$0xff] %v713
      %2387 = vst [vmem:[%s196 + $0x190] sm:$0xff] %v715
      %2388 = vst [vmem:[%s196 + $0x198] sm:$0xff] %v1162
      %2389 = vst [vmem:[%s196 + $0x1a0] sm:$0xff] %v1164
      %2390 = vst [vmem:[%s196 + $0x1a8] sm:$0xff] %v1611
      %2391 = vst [vmem:[%s196 + $0x1b0] sm:$0xff] %v1613
      %2392 = vst.msk [vmem:[%s196 + $0x1b8] sm:$0xff] %vm2342, %v2053
      %2393 = vst [vmem:[%s196 + $0x1c0] sm:$0xff] %v719
      %2394 = vst [vmem:[%s196 + $0x1c8] sm:$0xff] %v721
      %2395 = vst [vmem:[%s196 + $0x1d0] sm:$0xff] %v1168
      %2396 = vst [vmem:[%s196 + $0x1d8] sm:$0xff] %v1170
      %2397 = vst [vmem:[%s196 + $0x1e0] sm:$0xff] %v1617
      %2398 = vst [vmem:[%s196 + $0x1e8] sm:$0xff] %v1619
      %2399 = vst.msk [vmem:[%s196 + $0x1f0] sm:$0xff] %vm2342, %v2058
      %2400 = vst [vmem:[%s196 + $0x1f8] sm:$0xff] %v725
      %2401 = vst [vmem:[%s196 + $0x200] sm:$0xff] %v727
      %2402 = vst [vmem:[%s196 + $0x208] sm:$0xff] %v1174
      %2403 = vst [vmem:[%s196 + $0x210] sm:$0xff] %v1176
      %2404 = vst [vmem:[%s196 + $0x218] sm:$0xff] %v1623
      %2405 = vst [vmem:[%s196 + $0x220] sm:$0xff] %v1625
      %2406 = vst.msk [vmem:[%s196 + $0x228] sm:$0xff] %vm2342, %v2063
      %2407 = vst [vmem:[%s196 + $0x230] sm:$0xff] %v731
      %2408 = vst [vmem:[%s196 + $0x238] sm:$0xff] %v733
      %2409 = vst [vmem:[%s196 + $0x240] sm:$0xff] %v1180
      %2410 = vst [vmem:[%s196 + $0x248] sm:$0xff] %v1182
      %2411 = vst [vmem:[%s196 + $0x250] sm:$0xff] %v1629
      %2412 = vst [vmem:[%s196 + $0x258] sm:$0xff] %v1631
      %2413 = vst.msk [vmem:[%s196 + $0x260] sm:$0xff] %vm2342, %v2068
      %2414 = vst [vmem:[%s196 + $0x268] sm:$0xff] %v737
      %2415 = vst [vmem:[%s196 + $0x270] sm:$0xff] %v739
      %2416 = vst [vmem:[%s196 + $0x278] sm:$0xff] %v1186
      %2417 = vst [vmem:[%s196 + $0x280] sm:$0xff] %v1188
      %2418 = vst [vmem:[%s196 + $0x288] sm:$0xff] %v1635
      %2419 = vst [vmem:[%s196 + $0x290] sm:$0xff] %v1637
      %2420 = vst.msk [vmem:[%s196 + $0x298] sm:$0xff] %vm2342, %v2073
      %2421 = vst [vmem:[%s196 + $0x2a0] sm:$0xff] %v743
      %2422 = vst [vmem:[%s196 + $0x2a8] sm:$0xff] %v745
      %2423 = vst [vmem:[%s196 + $0x2b0] sm:$0xff] %v1192
      %2424 = vst [vmem:[%s196 + $0x2b8] sm:$0xff] %v1194
      %2425 = vst [vmem:[%s196 + $0x2c0] sm:$0xff] %v1641
      %2426 = vst [vmem:[%s196 + $0x2c8] sm:$0xff] %v1643
      %2427 = vst.msk [vmem:[%s196 + $0x2d0] sm:$0xff] %vm2342, %v2078
      %2428 = vst [vmem:[%s196 + $0x2d8] sm:$0xff] %v749
      %2429 = vst [vmem:[%s196 + $0x2e0] sm:$0xff] %v751
      %2430 = vst [vmem:[%s196 + $0x2e8] sm:$0xff] %v1198
      %2431 = vst [vmem:[%s196 + $0x2f0] sm:$0xff] %v1200
      %2432 = vst [vmem:[%s196 + $0x2f8] sm:$0xff] %v1647
      %2433 = vst [vmem:[%s196 + $0x300] sm:$0xff] %v1649
      %2434 = vst.msk [vmem:[%s196 + $0x308] sm:$0xff] %vm2342, %v2083
      %2435 = vst [vmem:[%s196 + $0x310] sm:$0xff] %v755
      %2436 = vst [vmem:[%s196 + $0x318] sm:$0xff] %v757
      %2437 = vst [vmem:[%s196 + $0x320] sm:$0xff] %v1204
      %2438 = vst [vmem:[%s196 + $0x328] sm:$0xff] %v1206
      %2439 = vst [vmem:[%s196 + $0x330] sm:$0xff] %v1653
      %2440 = vst [vmem:[%s196 + $0x338] sm:$0xff] %v1655
      %2441 = vst.msk [vmem:[%s196 + $0x340] sm:$0xff] %vm2342, %v2088
      %2442 = vst [vmem:[%s196 + $0x348] sm:$0xff] %v761
      %2443 = vst [vmem:[%s196 + $0x350] sm:$0xff] %v763
      %2444 = vst [vmem:[%s196 + $0x358] sm:$0xff] %v1210
      %2445 = vst [vmem:[%s196 + $0x360] sm:$0xff] %v1212
      %2446 = vst [vmem:[%s196 + $0x368] sm:$0xff] %v1659
      %2447 = vst [vmem:[%s196 + $0x370] sm:$0xff] %v1661
      %2448 = vst.msk [vmem:[%s196 + $0x378] sm:$0xff] %vm2342, %v2093
      %2449 = vst [vmem:[%s196 + $0x380] sm:$0xff] %v767
      %2450 = vst [vmem:[%s196 + $0x388] sm:$0xff] %v769
      %2451 = vst [vmem:[%s196 + $0x390] sm:$0xff] %v1216
      %2452 = vst [vmem:[%s196 + $0x398] sm:$0xff] %v1218
      %2453 = vst [vmem:[%s196 + $0x3a0] sm:$0xff] %v1665
      %2454 = vst [vmem:[%s196 + $0x3a8] sm:$0xff] %v1667
      %2455 = vst.msk [vmem:[%s196 + $0x3b0] sm:$0xff] %vm2342, %v2098
      %2456 = vst [vmem:[%s196 + $0x3b8] sm:$0xff] %v773
      %2457 = vst [vmem:[%s196 + $0x3c0] sm:$0xff] %v775
      %2458 = vst [vmem:[%s196 + $0x3c8] sm:$0xff] %v1222
      %2459 = vst [vmem:[%s196 + $0x3d0] sm:$0xff] %v1224
      %2460 = vst [vmem:[%s196 + $0x3d8] sm:$0xff] %v1671
      %2461 = vst [vmem:[%s196 + $0x3e0] sm:$0xff] %v1673
      %2462 = vst.msk [vmem:[%s196 + $0x3e8] sm:$0xff] %vm2342, %v2103
      %2463 = vst [vmem:[%s196 + $0x3f0] sm:$0xff] %v779
      %2464 = vst [vmem:[%s196 + $0x3f8] sm:$0xff] %v781
      %2465 = vst [vmem:[%s196 + $0x400] sm:$0xff] %v1228
      %2466 = vst [vmem:[%s196 + $0x408] sm:$0xff] %v1230
      %2467 = vst [vmem:[%s196 + $0x410] sm:$0xff] %v1677
      %2468 = vst [vmem:[%s196 + $0x418] sm:$0xff] %v1679
      %2469 = vst.msk [vmem:[%s196 + $0x420] sm:$0xff] %vm2342, %v2108
      %2470 = vst [vmem:[%s196 + $0x428] sm:$0xff] %v785
      %2471 = vst [vmem:[%s196 + $0x430] sm:$0xff] %v787
      %2472 = vst [vmem:[%s196 + $0x438] sm:$0xff] %v1234
      %2473 = vst [vmem:[%s196 + $0x440] sm:$0xff] %v1236
      %2474 = vst [vmem:[%s196 + $0x448] sm:$0xff] %v1683
      %2475 = vst [vmem:[%s196 + $0x450] sm:$0xff] %v1685
      %2476 = vst.msk [vmem:[%s196 + $0x458] sm:$0xff] %vm2342, %v2113
      %2477 = vst [vmem:[%s196 + $0x460] sm:$0xff] %v791
      %2478 = vst [vmem:[%s196 + $0x468] sm:$0xff] %v793
      %2479 = vst [vmem:[%s196 + $0x470] sm:$0xff] %v1240
      %2480 = vst [vmem:[%s196 + $0x478] sm:$0xff] %v1242
      %2481 = vst [vmem:[%s196 + $0x480] sm:$0xff] %v1689
      %2482 = vst [vmem:[%s196 + $0x488] sm:$0xff] %v1691
      %2483 = vst.msk [vmem:[%s196 + $0x490] sm:$0xff] %vm2342, %v2118
      %2484 = vst [vmem:[%s196 + $0x498] sm:$0xff] %v797
      %2485 = vst [vmem:[%s196 + $0x4a0] sm:$0xff] %v799
      %2486 = vst [vmem:[%s196 + $0x4a8] sm:$0xff] %v1246
      %2487 = vst [vmem:[%s196 + $0x4b0] sm:$0xff] %v1248
      %2488 = vst [vmem:[%s196 + $0x4b8] sm:$0xff] %v1695
      %2489 = vst [vmem:[%s196 + $0x4c0] sm:$0xff] %v1697
      %2490 = vst.msk [vmem:[%s196 + $0x4c8] sm:$0xff] %vm2342, %v2123
      %2491 = vst [vmem:[%s196 + $0x4d0] sm:$0xff] %v803
      %2492 = vst [vmem:[%s196 + $0x4d8] sm:$0xff] %v805
      %2493 = vst [vmem:[%s196 + $0x4e0] sm:$0xff] %v1252
      %2494 = vst [vmem:[%s196 + $0x4e8] sm:$0xff] %v1254
      %2495 = vst [vmem:[%s196 + $0x4f0] sm:$0xff] %v1701
      %2496 = vst [vmem:[%s196 + $0x4f8] sm:$0xff] %v1703
      %2497 = vst.msk [vmem:[%s196 + $0x500] sm:$0xff] %vm2342, %v2128
      %2498 = vst [vmem:[%s196 + $0x508] sm:$0xff] %v809
      %2499 = vst [vmem:[%s196 + $0x510] sm:$0xff] %v811
      %2500 = vst [vmem:[%s196 + $0x518] sm:$0xff] %v1258
      %2501 = vst [vmem:[%s196 + $0x520] sm:$0xff] %v1260
      %2502 = vst [vmem:[%s196 + $0x528] sm:$0xff] %v1707
      %2503 = vst [vmem:[%s196 + $0x530] sm:$0xff] %v1709
      %2504 = vst.msk [vmem:[%s196 + $0x538] sm:$0xff] %vm2342, %v2133
      %2505 = vst [vmem:[%s196 + $0x540] sm:$0xff] %v815
      %2506 = vst [vmem:[%s196 + $0x548] sm:$0xff] %v817
      %2507 = vst [vmem:[%s196 + $0x550] sm:$0xff] %v1264
      %2508 = vst [vmem:[%s196 + $0x558] sm:$0xff] %v1266
      %2509 = vst [vmem:[%s196 + $0x560] sm:$0xff] %v1713
      %2510 = vst [vmem:[%s196 + $0x568] sm:$0xff] %v1715
      %2511 = vst.msk [vmem:[%s196 + $0x570] sm:$0xff] %vm2342, %v2138
      %2512 = vst [vmem:[%s196 + $0x578] sm:$0xff] %v821
      %2513 = vst [vmem:[%s196 + $0x580] sm:$0xff] %v823
      %2514 = vst [vmem:[%s196 + $0x588] sm:$0xff] %v1270
      %2515 = vst [vmem:[%s196 + $0x590] sm:$0xff] %v1272
      %2516 = vst [vmem:[%s196 + $0x598] sm:$0xff] %v1719
      %2517 = vst [vmem:[%s196 + $0x5a0] sm:$0xff] %v1721
      %2518 = vst.msk [vmem:[%s196 + $0x5a8] sm:$0xff] %vm2342, %v2143
      %2519 = vst [vmem:[%s196 + $0x5b0] sm:$0xff] %v827
      %2520 = vst [vmem:[%s196 + $0x5b8] sm:$0xff] %v829
      %2521 = vst [vmem:[%s196 + $0x5c0] sm:$0xff] %v1276
      %2522 = vst [vmem:[%s196 + $0x5c8] sm:$0xff] %v1278
      %2523 = vst [vmem:[%s196 + $0x5d0] sm:$0xff] %v1725
      %2524 = vst [vmem:[%s196 + $0x5d8] sm:$0xff] %v1727
      %2525 = vst.msk [vmem:[%s196 + $0x5e0] sm:$0xff] %vm2342, %v2148
      %2526 = vst [vmem:[%s196 + $0x5e8] sm:$0xff] %v833
      %2527 = vst [vmem:[%s196 + $0x5f0] sm:$0xff] %v835
      %2528 = vst [vmem:[%s196 + $0x5f8] sm:$0xff] %v1282
      %2529 = vst [vmem:[%s196 + $0x600] sm:$0xff] %v1284
      %2530 = vst [vmem:[%s196 + $0x608] sm:$0xff] %v1731
      %2531 = vst [vmem:[%s196 + $0x610] sm:$0xff] %v1733
      %2532 = vst.msk [vmem:[%s196 + $0x618] sm:$0xff] %vm2342, %v2153
      %2533 = vst [vmem:[%s196 + $0x620] sm:$0xff] %v839
      %2534 = vst [vmem:[%s196 + $0x628] sm:$0xff] %v841
      %2535 = vst [vmem:[%s196 + $0x630] sm:$0xff] %v1288
      %2536 = vst [vmem:[%s196 + $0x638] sm:$0xff] %v1290
      %2537 = vst [vmem:[%s196 + $0x640] sm:$0xff] %v1737
      %2538 = vst [vmem:[%s196 + $0x648] sm:$0xff] %v1739
      %2539 = vst.msk [vmem:[%s196 + $0x650] sm:$0xff] %vm2342, %v2158
      %2540 = vst [vmem:[%s196 + $0x658] sm:$0xff] %v845
      %2541 = vst [vmem:[%s196 + $0x660] sm:$0xff] %v847
      %2542 = vst [vmem:[%s196 + $0x668] sm:$0xff] %v1294
      %2543 = vst [vmem:[%s196 + $0x670] sm:$0xff] %v1296
      %2544 = vst [vmem:[%s196 + $0x678] sm:$0xff] %v1743
      %2545 = vst [vmem:[%s196 + $0x680] sm:$0xff] %v1745
      %2546 = vst.msk [vmem:[%s196 + $0x688] sm:$0xff] %vm2342, %v2163
      %2547 = vst [vmem:[%s196 + $0x690] sm:$0xff] %v851
      %2548 = vst [vmem:[%s196 + $0x698] sm:$0xff] %v853
      %2549 = vst [vmem:[%s196 + $0x6a0] sm:$0xff] %v1300
      %2550 = vst [vmem:[%s196 + $0x6a8] sm:$0xff] %v1302
      %2551 = vst [vmem:[%s196 + $0x6b0] sm:$0xff] %v1749
      %2552 = vst [vmem:[%s196 + $0x6b8] sm:$0xff] %v1751
      %2553 = vst.msk [vmem:[%s196 + $0x6c0] sm:$0xff] %vm2342, %v2168
      %2554 = vst [vmem:[%s196 + $0x6c8] sm:$0xff] %v857
      %2555 = vst [vmem:[%s196 + $0x6d0] sm:$0xff] %v859
      %2556 = vst [vmem:[%s196 + $0x6d8] sm:$0xff] %v1306
      %2557 = vst [vmem:[%s196 + $0x6e0] sm:$0xff] %v1308
      %2558 = vst [vmem:[%s196 + $0x6e8] sm:$0xff] %v1755
      %2559 = vst [vmem:[%s196 + $0x6f0] sm:$0xff] %v1757
      %2560 = vst.msk [vmem:[%s196 + $0x6f8] sm:$0xff] %vm2342, %v2173
      %2561 = vst [vmem:[%s196 + $0x700] sm:$0xff] %v863
      %2562 = vst [vmem:[%s196 + $0x708] sm:$0xff] %v865
      %2563 = vst [vmem:[%s196 + $0x710] sm:$0xff] %v1312
      %2564 = vst [vmem:[%s196 + $0x718] sm:$0xff] %v1314
      %2565 = vst [vmem:[%s196 + $0x720] sm:$0xff] %v1761
      %2566 = vst [vmem:[%s196 + $0x728] sm:$0xff] %v1763
      %2567 = vst.msk [vmem:[%s196 + $0x730] sm:$0xff] %vm2342, %v2178
      %2568 = vst [vmem:[%s196 + $0x738] sm:$0xff] %v869
      %2569 = vst [vmem:[%s196 + $0x740] sm:$0xff] %v871
      %2570 = vst [vmem:[%s196 + $0x748] sm:$0xff] %v1318
      %2571 = vst [vmem:[%s196 + $0x750] sm:$0xff] %v1320
      %2572 = vst [vmem:[%s196 + $0x758] sm:$0xff] %v1767
      %2573 = vst [vmem:[%s196 + $0x760] sm:$0xff] %v1769
      %2574 = vst.msk [vmem:[%s196 + $0x768] sm:$0xff] %vm2342, %v2183
      %2575 = vst [vmem:[%s196 + $0x770] sm:$0xff] %v875
      %2576 = vst [vmem:[%s196 + $0x778] sm:$0xff] %v877
      %2577 = vst [vmem:[%s196 + $0x780] sm:$0xff] %v1324
      %2578 = vst [vmem:[%s196 + $0x788] sm:$0xff] %v1326
      %2579 = vst [vmem:[%s196 + $0x790] sm:$0xff] %v1773
      %2580 = vst [vmem:[%s196 + $0x798] sm:$0xff] %v1775
      %2581 = vst.msk [vmem:[%s196 + $0x7a0] sm:$0xff] %vm2342, %v2188
      %2582 = vst [vmem:[%s196 + $0x7a8] sm:$0xff] %v881
      %2583 = vst [vmem:[%s196 + $0x7b0] sm:$0xff] %v883
      %2584 = vst [vmem:[%s196 + $0x7b8] sm:$0xff] %v1330
      %2585 = vst [vmem:[%s196 + $0x7c0] sm:$0xff] %v1332
      %2586 = vst [vmem:[%s196 + $0x7c8] sm:$0xff] %v1779
      %2587 = vst [vmem:[%s196 + $0x7d0] sm:$0xff] %v1781
      %2588 = vst.msk [vmem:[%s196 + $0x7d8] sm:$0xff] %vm2342, %v2193
      %2589 = vst [vmem:[%s196 + $0x7e0] sm:$0xff] %v887
      %2590 = vst [vmem:[%s196 + $0x7e8] sm:$0xff] %v889
      %2591 = vst [vmem:[%s196 + $0x7f0] sm:$0xff] %v1336
      %2592 = vst [vmem:[%s196 + $0x7f8] sm:$0xff] %v1338
      %2593 = vst [vmem:[%s196 + $0x800] sm:$0xff] %v1785
      %2594 = vst [vmem:[%s196 + $0x808] sm:$0xff] %v1787
      %2595 = vst.msk [vmem:[%s196 + $0x810] sm:$0xff] %vm2342, %v2198
      %2596 = vst [vmem:[%s196 + $0x818] sm:$0xff] %v893
      %2597 = vst [vmem:[%s196 + $0x820] sm:$0xff] %v895
      %2598 = vst [vmem:[%s196 + $0x828] sm:$0xff] %v1342
      %2599 = vst [vmem:[%s196 + $0x830] sm:$0xff] %v1344
      %2600 = vst [vmem:[%s196 + $0x838] sm:$0xff] %v1791
      %2601 = vst [vmem:[%s196 + $0x840] sm:$0xff] %v1793
      %2602 = vst.msk [vmem:[%s196 + $0x848] sm:$0xff] %vm2342, %v2203
      %2603 = vst [vmem:[%s196 + $0x850] sm:$0xff] %v899
      %2604 = vst [vmem:[%s196 + $0x858] sm:$0xff] %v901
      %2605 = vst [vmem:[%s196 + $0x860] sm:$0xff] %v1348
      %2606 = vst [vmem:[%s196 + $0x868] sm:$0xff] %v1350
      %2607 = vst [vmem:[%s196 + $0x870] sm:$0xff] %v1797
      %2608 = vst [vmem:[%s196 + $0x878] sm:$0xff] %v1799
      %2609 = vst.msk [vmem:[%s196 + $0x880] sm:$0xff] %vm2342, %v2208
      %2610 = vst [vmem:[%s196 + $0x888] sm:$0xff] %v905
      %2611 = vst [vmem:[%s196 + $0x890] sm:$0xff] %v907
      %2612 = vst [vmem:[%s196 + $0x898] sm:$0xff] %v1354
      %2613 = vst [vmem:[%s196 + $0x8a0] sm:$0xff] %v1356
      %2614 = vst [vmem:[%s196 + $0x8a8] sm:$0xff] %v1803
      %2615 = vst [vmem:[%s196 + $0x8b0] sm:$0xff] %v1805
      %2616 = vst.msk [vmem:[%s196 + $0x8b8] sm:$0xff] %vm2342, %v2213
      %2617 = vst [vmem:[%s196 + $0x8c0] sm:$0xff] %v911
      %2618 = vst [vmem:[%s196 + $0x8c8] sm:$0xff] %v913
      %2619 = vst [vmem:[%s196 + $0x8d0] sm:$0xff] %v1360
      %2620 = vst [vmem:[%s196 + $0x8d8] sm:$0xff] %v1362
      %2621 = vst [vmem:[%s196 + $0x8e0] sm:$0xff] %v1809
      %2622 = vst [vmem:[%s196 + $0x8e8] sm:$0xff] %v1811
      %2623 = vst.msk [vmem:[%s196 + $0x8f0] sm:$0xff] %vm2342, %v2218
      %2624 = vst [vmem:[%s196 + $0x8f8] sm:$0xff] %v917
      %2625 = vst [vmem:[%s196 + $0x900] sm:$0xff] %v919
      %2626 = vst [vmem:[%s196 + $0x908] sm:$0xff] %v1366
      %2627 = vst [vmem:[%s196 + $0x910] sm:$0xff] %v1368
      %2628 = vst [vmem:[%s196 + $0x918] sm:$0xff] %v1815
      %2629 = vst [vmem:[%s196 + $0x920] sm:$0xff] %v1817
      %2630 = vst.msk [vmem:[%s196 + $0x928] sm:$0xff] %vm2342, %v2223
      %2631 = vst [vmem:[%s196 + $0x930] sm:$0xff] %v923
      %2632 = vst [vmem:[%s196 + $0x938] sm:$0xff] %v925
      %2633 = vst [vmem:[%s196 + $0x940] sm:$0xff] %v1372
      %2634 = vst [vmem:[%s196 + $0x948] sm:$0xff] %v1374
      %2635 = vst [vmem:[%s196 + $0x950] sm:$0xff] %v1821
      %2636 = vst [vmem:[%s196 + $0x958] sm:$0xff] %v1823
      %2637 = vst.msk [vmem:[%s196 + $0x960] sm:$0xff] %vm2342, %v2228
      %2638 = vst [vmem:[%s196 + $0x968] sm:$0xff] %v929
      %2639 = vst [vmem:[%s196 + $0x970] sm:$0xff] %v931
      %2640 = vst [vmem:[%s196 + $0x978] sm:$0xff] %v1378
      %2641 = vst [vmem:[%s196 + $0x980] sm:$0xff] %v1380
      %2642 = vst [vmem:[%s196 + $0x988] sm:$0xff] %v1827
      %2643 = vst [vmem:[%s196 + $0x990] sm:$0xff] %v1829
      %2644 = vst.msk [vmem:[%s196 + $0x998] sm:$0xff] %vm2342, %v2233
      %2645 = vst [vmem:[%s196 + $0x9a0] sm:$0xff] %v935
      %2646 = vst [vmem:[%s196 + $0x9a8] sm:$0xff] %v937
      %2647 = vst [vmem:[%s196 + $0x9b0] sm:$0xff] %v1384
      %2648 = vst [vmem:[%s196 + $0x9b8] sm:$0xff] %v1386
      %2649 = vst [vmem:[%s196 + $0x9c0] sm:$0xff] %v1833
      %2650 = vst [vmem:[%s196 + $0x9c8] sm:$0xff] %v1835
      %2651 = vst.msk [vmem:[%s196 + $0x9d0] sm:$0xff] %vm2342, %v2238
      %2652 = vst [vmem:[%s196 + $0x9d8] sm:$0xff] %v941
      %2653 = vst [vmem:[%s196 + $0x9e0] sm:$0xff] %v943
      %2654 = vst [vmem:[%s196 + $0x9e8] sm:$0xff] %v1390
      %2655 = vst [vmem:[%s196 + $0x9f0] sm:$0xff] %v1392
      %2656 = vst [vmem:[%s196 + $0x9f8] sm:$0xff] %v1839
      %2657 = vst [vmem:[%s196 + $0xa00] sm:$0xff] %v1841
      %2658 = vst.msk [vmem:[%s196 + $0xa08] sm:$0xff] %vm2342, %v2243
      %2659 = vst [vmem:[%s196 + $0xa10] sm:$0xff] %v947
      %2660 = vst [vmem:[%s196 + $0xa18] sm:$0xff] %v949
      %2661 = vst [vmem:[%s196 + $0xa20] sm:$0xff] %v1396
      %2662 = vst [vmem:[%s196 + $0xa28] sm:$0xff] %v1398
      %2663 = vst [vmem:[%s196 + $0xa30] sm:$0xff] %v1845
      %2664 = vst [vmem:[%s196 + $0xa38] sm:$0xff] %v1847
      %2665 = vst.msk [vmem:[%s196 + $0xa40] sm:$0xff] %vm2342, %v2248
      %2666 = vst [vmem:[%s196 + $0xa48] sm:$0xff] %v953
      %2667 = vst [vmem:[%s196 + $0xa50] sm:$0xff] %v955
      %2668 = vst [vmem:[%s196 + $0xa58] sm:$0xff] %v1402
      %2669 = vst [vmem:[%s196 + $0xa60] sm:$0xff] %v1404
      %2670 = vst [vmem:[%s196 + $0xa68] sm:$0xff] %v1851
      %2671 = vst [vmem:[%s196 + $0xa70] sm:$0xff] %v1853
      %2672 = vst.msk [vmem:[%s196 + $0xa78] sm:$0xff] %vm2342, %v2253
      %2673 = vst [vmem:[%s196 + $0xa80] sm:$0xff] %v959
      %2674 = vst [vmem:[%s196 + $0xa88] sm:$0xff] %v961
      %2675 = vst [vmem:[%s196 + $0xa90] sm:$0xff] %v1408
      %2676 = vst [vmem:[%s196 + $0xa98] sm:$0xff] %v1410
      %2677 = vst [vmem:[%s196 + $0xaa0] sm:$0xff] %v1857
      %2678 = vst [vmem:[%s196 + $0xaa8] sm:$0xff] %v1859
      %2679 = vst.msk [vmem:[%s196 + $0xab0] sm:$0xff] %vm2342, %v2258
      %2680 = vst [vmem:[%s196 + $0xab8] sm:$0xff] %v965
      %2681 = vst [vmem:[%s196 + $0xac0] sm:$0xff] %v967
      %2682 = vst [vmem:[%s196 + $0xac8] sm:$0xff] %v1414
      %2683 = vst [vmem:[%s196 + $0xad0] sm:$0xff] %v1416
      %2684 = vst [vmem:[%s196 + $0xad8] sm:$0xff] %v1863
      %2685 = vst [vmem:[%s196 + $0xae0] sm:$0xff] %v1865
      %2686 = vst.msk [vmem:[%s196 + $0xae8] sm:$0xff] %vm2342, %v2263
      %2687 = vst [vmem:[%s196 + $0xaf0] sm:$0xff] %v971
      %2688 = vst [vmem:[%s196 + $0xaf8] sm:$0xff] %v973
      %2689 = vst [vmem:[%s196 + $0xb00] sm:$0xff] %v1420
      %2690 = vst [vmem:[%s196 + $0xb08] sm:$0xff] %v1422
      %2691 = vst [vmem:[%s196 + $0xb10] sm:$0xff] %v1869
      %2692 = vst [vmem:[%s196 + $0xb18] sm:$0xff] %v1871
      %2693 = vst.msk [vmem:[%s196 + $0xb20] sm:$0xff] %vm2342, %v2268
      %2694 = vst [vmem:[%s196 + $0xb28] sm:$0xff] %v977
      %2695 = vst [vmem:[%s196 + $0xb30] sm:$0xff] %v979
      %2696 = vst [vmem:[%s196 + $0xb38] sm:$0xff] %v1426
      %2697 = vst [vmem:[%s196 + $0xb40] sm:$0xff] %v1428
      %2698 = vst [vmem:[%s196 + $0xb48] sm:$0xff] %v1875
      %2699 = vst [vmem:[%s196 + $0xb50] sm:$0xff] %v1877
      %2700 = vst.msk [vmem:[%s196 + $0xb58] sm:$0xff] %vm2342, %v2273
      %2701 = vst [vmem:[%s196 + $0xb60] sm:$0xff] %v983
      %2702 = vst [vmem:[%s196 + $0xb68] sm:$0xff] %v985
      %2703 = vst [vmem:[%s196 + $0xb70] sm:$0xff] %v1432
      %2704 = vst [vmem:[%s196 + $0xb78] sm:$0xff] %v1434
      %2705 = vst [vmem:[%s196 + $0xb80] sm:$0xff] %v1881
      %2706 = vst [vmem:[%s196 + $0xb88] sm:$0xff] %v1883
      %2707 = vst.msk [vmem:[%s196 + $0xb90] sm:$0xff] %vm2342, %v2278
      %2708 = vst [vmem:[%s196 + $0xb98] sm:$0xff] %v989
      %2709 = vst [vmem:[%s196 + $0xba0] sm:$0xff] %v991
      %2710 = vst [vmem:[%s196 + $0xba8] sm:$0xff] %v1438
      %2711 = vst [vmem:[%s196 + $0xbb0] sm:$0xff] %v1440
      %2712 = vst [vmem:[%s196 + $0xbb8] sm:$0xff] %v1887
      %2713 = vst [vmem:[%s196 + $0xbc0] sm:$0xff] %v1889
      %2714 = vst.msk [vmem:[%s196 + $0xbc8] sm:$0xff] %vm2342, %v2283
      %2715 = vst [vmem:[%s196 + $0xbd0] sm:$0xff] %v995
      %2716 = vst [vmem:[%s196 + $0xbd8] sm:$0xff] %v997
      %2717 = vst [vmem:[%s196 + $0xbe0] sm:$0xff] %v1444
      %2718 = vst [vmem:[%s196 + $0xbe8] sm:$0xff] %v1446
      %2719 = vst [vmem:[%s196 + $0xbf0] sm:$0xff] %v1893
      %2720 = vst [vmem:[%s196 + $0xbf8] sm:$0xff] %v1895
      %2721 = vst.msk [vmem:[%s196 + $0xc00] sm:$0xff] %vm2342, %v2288
      %2722 = vst [vmem:[%s196 + $0xc08] sm:$0xff] %v1001
      %2723 = vst [vmem:[%s196 + $0xc10] sm:$0xff] %v1003
      %2724 = vst [vmem:[%s196 + $0xc18] sm:$0xff] %v1450
      %2725 = vst [vmem:[%s196 + $0xc20] sm:$0xff] %v1452
      %2726 = vst [vmem:[%s196 + $0xc28] sm:$0xff] %v1899
      %2727 = vst [vmem:[%s196 + $0xc30] sm:$0xff] %v1901
      %2728 = vst.msk [vmem:[%s196 + $0xc38] sm:$0xff] %vm2342, %v2293
      %2729 = vst [vmem:[%s196 + $0xc40] sm:$0xff] %v1007
      %2730 = vst [vmem:[%s196 + $0xc48] sm:$0xff] %v1009
      %2731 = vst [vmem:[%s196 + $0xc50] sm:$0xff] %v1456
      %2732 = vst [vmem:[%s196 + $0xc58] sm:$0xff] %v1458
      %2733 = vst [vmem:[%s196 + $0xc60] sm:$0xff] %v1905
      %2734 = vst [vmem:[%s196 + $0xc68] sm:$0xff] %v1907
      %2735 = vst.msk [vmem:[%s196 + $0xc70] sm:$0xff] %vm2342, %v2298
      %2736 = vst [vmem:[%s196 + $0xc78] sm:$0xff] %v1013
      %2737 = vst [vmem:[%s196 + $0xc80] sm:$0xff] %v1015
      %2738 = vst [vmem:[%s196 + $0xc88] sm:$0xff] %v1462
      %2739 = vst [vmem:[%s196 + $0xc90] sm:$0xff] %v1464
      %2740 = vst [vmem:[%s196 + $0xc98] sm:$0xff] %v1911
      %2741 = vst [vmem:[%s196 + $0xca0] sm:$0xff] %v1913
      %2742 = vst.msk [vmem:[%s196 + $0xca8] sm:$0xff] %vm2342, %v2303
      %2743 = vst [vmem:[%s196 + $0xcb0] sm:$0xff] %v1019
      %2744 = vst [vmem:[%s196 + $0xcb8] sm:$0xff] %v1021
      %2745 = vst [vmem:[%s196 + $0xcc0] sm:$0xff] %v1468
      %2746 = vst [vmem:[%s196 + $0xcc8] sm:$0xff] %v1470
      %2747 = vst [vmem:[%s196 + $0xcd0] sm:$0xff] %v1917
      %2748 = vst [vmem:[%s196 + $0xcd8] sm:$0xff] %v1919
      %2749 = vst.msk [vmem:[%s196 + $0xce0] sm:$0xff] %vm2342, %v2308
      %2750 = vst [vmem:[%s196 + $0xce8] sm:$0xff] %v1025
      %2751 = vst [vmem:[%s196 + $0xcf0] sm:$0xff] %v1027
      %2752 = vst [vmem:[%s196 + $0xcf8] sm:$0xff] %v1474
      %2753 = vst [vmem:[%s196 + $0xd00] sm:$0xff] %v1476
      %2754 = vst [vmem:[%s196 + $0xd08] sm:$0xff] %v1923
      %2755 = vst [vmem:[%s196 + $0xd10] sm:$0xff] %v1925
      %2756 = vst.msk [vmem:[%s196 + $0xd18] sm:$0xff] %vm2342, %v2313
      %2757 = vst [vmem:[%s196 + $0xd20] sm:$0xff] %v1031
      %2758 = vst [vmem:[%s196 + $0xd28] sm:$0xff] %v1033
      %2759 = vst [vmem:[%s196 + $0xd30] sm:$0xff] %v1480
      %2760 = vst [vmem:[%s196 + $0xd38] sm:$0xff] %v1482
      %2761 = vst [vmem:[%s196 + $0xd40] sm:$0xff] %v1929
      %2762 = vst [vmem:[%s196 + $0xd48] sm:$0xff] %v1931
      %2763 = vst.msk [vmem:[%s196 + $0xd50] sm:$0xff] %vm2342, %v2318
      %2764 = vst [vmem:[%s196 + $0xd58] sm:$0xff] %v1037
      %2765 = vst [vmem:[%s196 + $0xd60] sm:$0xff] %v1039
      %2766 = vst [vmem:[%s196 + $0xd68] sm:$0xff] %v1486
      %2767 = vst [vmem:[%s196 + $0xd70] sm:$0xff] %v1488
      %2768 = vst [vmem:[%s196 + $0xd78] sm:$0xff] %v1935
      %2769 = vst [vmem:[%s196 + $0xd80] sm:$0xff] %v1937
      %2770 = vst.msk [vmem:[%s196 + $0xd88] sm:$0xff] %vm2342, %v2323
      %2771 = vst [vmem:[%s196 + $0xd90] sm:$0xff] %v1043
      %2772 = vst [vmem:[%s196 + $0xd98] sm:$0xff] %v1045
      %2773 = vst [vmem:[%s196 + $0xda0] sm:$0xff] %v1492
      %2774 = vst [vmem:[%s196 + $0xda8] sm:$0xff] %v1494
      %2775 = vst [vmem:[%s196 + $0xdb0] sm:$0xff] %v1941
      %2776 = vst [vmem:[%s196 + $0xdb8] sm:$0xff] %v1943
      %2777 = vst.msk [vmem:[%s196 + $0xdc0] sm:$0xff] %vm2342, %v2328
      %2778 = vst [vmem:[%s196 + $0xdc8] sm:$0xff] %v1049
      %2779 = vst [vmem:[%s196 + $0xdd0] sm:$0xff] %v1051
      %2780 = vst [vmem:[%s196 + $0xdd8] sm:$0xff] %v1498
      %2781 = vst [vmem:[%s196 + $0xde0] sm:$0xff] %v1500
      %2782 = vst [vmem:[%s196 + $0xde8] sm:$0xff] %v1947
      %2783 = vst [vmem:[%s196 + $0xdf0] sm:$0xff] %v1949
      %2784 = vst.msk [vmem:[%s196 + $0xdf8] sm:$0xff] %vm2342, %v2333
      %v2785 = vld [vmem:[%s189] sm:$0xff]
      %v2786 = vld [vmem:[%s189 + $0x8] sm:$0xff]
      %v2787 = vld [vmem:[%s189 + $0x10] sm:$0xff]
      %v2788 = vld [vmem:[%s189 + $0x18] sm:$0xff]
      %v2789 = vld [vmem:[%s189 + $0x20] sm:$0xff]
      %v2790 = vld [vmem:[%s189 + $0x28] sm:$0xff]
      %v2791 = vld [vmem:[%s189 + $0x30] sm:$0xff]
      %v2792 = vld [vmem:[%s189 + $0x38] sm:$0xff]
      %v2793 = vld [vmem:[%s189 + $0x40] sm:$0xff]
      %v2794 = vld [vmem:[%s189 + $0x48] sm:$0xff]
      %v2795 = vld [vmem:[%s189 + $0x50] sm:$0xff]
      %v2796 = vld [vmem:[%s189 + $0x58] sm:$0xff]
      %v2797 = vld [vmem:[%s189 + $0x60] sm:$0xff]
      %v2798 = vld [vmem:[%s189 + $0x68] sm:$0xff]
      %v2799 = vld [vmem:[%s189 + $0x70] sm:$0xff]
      %v2800 = vld [vmem:[%s189 + $0x78] sm:$0xff]
      %v2801 = vld [vmem:[%s189 + $0x80] sm:$0xff]
      %v2802 = vld [vmem:[%s189 + $0x88] sm:$0xff]
      %v2803 = vld [vmem:[%s189 + $0x90] sm:$0xff]
      %v2804 = vld [vmem:[%s189 + $0x98] sm:$0xff]
      %v2805 = vld [vmem:[%s189 + $0xa0] sm:$0xff]
      %v2806 = vld [vmem:[%s189 + $0xa8] sm:$0xff]
      %v2807 = vld [vmem:[%s189 + $0xb0] sm:$0xff]
      %v2808 = vld [vmem:[%s189 + $0xb8] sm:$0xff]
      %v2809 = vld [vmem:[%s189 + $0xc0] sm:$0xff]
      %v2810 = vld [vmem:[%s189 + $0xc8] sm:$0xff]
      %v2811 = vld [vmem:[%s189 + $0xd0] sm:$0xff]
      %v2812 = vld [vmem:[%s189 + $0xd8] sm:$0xff]
      %v2813 = vld [vmem:[%s189 + $0xe0] sm:$0xff]
      %v2814 = vld [vmem:[%s189 + $0xe8] sm:$0xff]
      %v2815 = vld [vmem:[%s189 + $0xf0] sm:$0xff]
      %v2816 = vld [vmem:[%s189 + $0xf8] sm:$0xff]
      %v2817 = vld [vmem:[%s189 + $0x100] sm:$0xff]
      %v2818 = vld [vmem:[%s189 + $0x108] sm:$0xff]
      %v2819 = vld [vmem:[%s189 + $0x110] sm:$0xff]
      %v2820 = vld [vmem:[%s189 + $0x118] sm:$0xff]
      %v2821 = vld [vmem:[%s189 + $0x120] sm:$0xff]
      %v2822 = vld [vmem:[%s189 + $0x128] sm:$0xff]
      %v2823 = vld [vmem:[%s189 + $0x130] sm:$0xff]
      %v2824 = vld [vmem:[%s189 + $0x138] sm:$0xff]
      %v2825 = vld [vmem:[%s189 + $0x140] sm:$0xff]
      %v2826 = vld [vmem:[%s189 + $0x148] sm:$0xff]
      %v2827 = vld [vmem:[%s189 + $0x150] sm:$0xff]
      %v2828 = vld [vmem:[%s189 + $0x158] sm:$0xff]
      %v2829 = vld [vmem:[%s189 + $0x160] sm:$0xff]
      %v2830 = vld [vmem:[%s189 + $0x168] sm:$0xff]
      %v2831 = vld [vmem:[%s189 + $0x170] sm:$0xff]
      %v2832 = vld [vmem:[%s189 + $0x178] sm:$0xff]
      %v2833 = vld [vmem:[%s189 + $0x180] sm:$0xff]
      %v2834 = vld [vmem:[%s189 + $0x188] sm:$0xff]
      %v2835 = vld [vmem:[%s189 + $0x190] sm:$0xff]
      %v2836 = vld [vmem:[%s189 + $0x198] sm:$0xff]
      %v2837 = vld [vmem:[%s189 + $0x1a0] sm:$0xff]
      %v2838 = vld [vmem:[%s189 + $0x1a8] sm:$0xff]
      %v2839 = vld [vmem:[%s189 + $0x1b0] sm:$0xff]
      %v2840 = vld [vmem:[%s189 + $0x1b8] sm:$0xff]
      %v2841 = vld [vmem:[%s189 + $0x1c0] sm:$0xff]
      %v2842 = vld [vmem:[%s189 + $0x1c8] sm:$0xff]
      %v2843 = vld [vmem:[%s189 + $0x1d0] sm:$0xff]
      %v2844 = vld [vmem:[%s189 + $0x1d8] sm:$0xff]
      %v2845 = vld [vmem:[%s189 + $0x1e0] sm:$0xff]
      %v2846 = vld [vmem:[%s189 + $0x1e8] sm:$0xff]
      %v2847 = vld [vmem:[%s189 + $0x1f0] sm:$0xff]
      %v2848 = vld [vmem:[%s189 + $0x1f8] sm:$0xff]
      %vm2849 = vcmask 523264
      %2850 = vst.msk [vmem:[%s196] sm:$0xff] %vm2849, %v2785
      %2851 = vst.msk [vmem:[%s196 + $0x38] sm:$0xff] %vm2849, %v2786
      %2852 = vst.msk [vmem:[%s196 + $0x70] sm:$0xff] %vm2849, %v2787
      %2853 = vst.msk [vmem:[%s196 + $0xa8] sm:$0xff] %vm2849, %v2788
      %2854 = vst.msk [vmem:[%s196 + $0xe0] sm:$0xff] %vm2849, %v2789
      %2855 = vst.msk [vmem:[%s196 + $0x118] sm:$0xff] %vm2849, %v2790
      %2856 = vst.msk [vmem:[%s196 + $0x150] sm:$0xff] %vm2849, %v2791
      %2857 = vst.msk [vmem:[%s196 + $0x188] sm:$0xff] %vm2849, %v2792
      %2858 = vst.msk [vmem:[%s196 + $0x1c0] sm:$0xff] %vm2849, %v2793
      %2859 = vst.msk [vmem:[%s196 + $0x1f8] sm:$0xff] %vm2849, %v2794
      %2860 = vst.msk [vmem:[%s196 + $0x230] sm:$0xff] %vm2849, %v2795
      %2861 = vst.msk [vmem:[%s196 + $0x268] sm:$0xff] %vm2849, %v2796
      %2862 = vst.msk [vmem:[%s196 + $0x2a0] sm:$0xff] %vm2849, %v2797
      %2863 = vst.msk [vmem:[%s196 + $0x2d8] sm:$0xff] %vm2849, %v2798
      %2864 = vst.msk [vmem:[%s196 + $0x310] sm:$0xff] %vm2849, %v2799
      %2865 = vst.msk [vmem:[%s196 + $0x348] sm:$0xff] %vm2849, %v2800
      %2866 = vst.msk [vmem:[%s196 + $0x380] sm:$0xff] %vm2849, %v2801
      %2867 = vst.msk [vmem:[%s196 + $0x3b8] sm:$0xff] %vm2849, %v2802
      %2868 = vst.msk [vmem:[%s196 + $0x3f0] sm:$0xff] %vm2849, %v2803
      %2869 = vst.msk [vmem:[%s196 + $0x428] sm:$0xff] %vm2849, %v2804
      %2870 = vst.msk [vmem:[%s196 + $0x460] sm:$0xff] %vm2849, %v2805
      %2871 = vst.msk [vmem:[%s196 + $0x498] sm:$0xff] %vm2849, %v2806
      %2872 = vst.msk [vmem:[%s196 + $0x4d0] sm:$0xff] %vm2849, %v2807
      %2873 = vst.msk [vmem:[%s196 + $0x508] sm:$0xff] %vm2849, %v2808
      %2874 = vst.msk [vmem:[%s196 + $0x540] sm:$0xff] %vm2849, %v2809
      %2875 = vst.msk [vmem:[%s196 + $0x578] sm:$0xff] %vm2849, %v2810
      %2876 = vst.msk [vmem:[%s196 + $0x5b0] sm:$0xff] %vm2849, %v2811
      %2877 = vst.msk [vmem:[%s196 + $0x5e8] sm:$0xff] %vm2849, %v2812
      %2878 = vst.msk [vmem:[%s196 + $0x620] sm:$0xff] %vm2849, %v2813
      %2879 = vst.msk [vmem:[%s196 + $0x658] sm:$0xff] %vm2849, %v2814
      %2880 = vst.msk [vmem:[%s196 + $0x690] sm:$0xff] %vm2849, %v2815
      %2881 = vst.msk [vmem:[%s196 + $0x6c8] sm:$0xff] %vm2849, %v2816
      %2882 = vst.msk [vmem:[%s196 + $0x700] sm:$0xff] %vm2849, %v2817
      %2883 = vst.msk [vmem:[%s196 + $0x738] sm:$0xff] %vm2849, %v2818
      %2884 = vst.msk [vmem:[%s196 + $0x770] sm:$0xff] %vm2849, %v2819
      %2885 = vst.msk [vmem:[%s196 + $0x7a8] sm:$0xff] %vm2849, %v2820
      %2886 = vst.msk [vmem:[%s196 + $0x7e0] sm:$0xff] %vm2849, %v2821
      %2887 = vst.msk [vmem:[%s196 + $0x818] sm:$0xff] %vm2849, %v2822
      %2888 = vst.msk [vmem:[%s196 + $0x850] sm:$0xff] %vm2849, %v2823
      %2889 = vst.msk [vmem:[%s196 + $0x888] sm:$0xff] %vm2849, %v2824
      %2890 = vst.msk [vmem:[%s196 + $0x8c0] sm:$0xff] %vm2849, %v2825
      %2891 = vst.msk [vmem:[%s196 + $0x8f8] sm:$0xff] %vm2849, %v2826
      %2892 = vst.msk [vmem:[%s196 + $0x930] sm:$0xff] %vm2849, %v2827
      %2893 = vst.msk [vmem:[%s196 + $0x968] sm:$0xff] %vm2849, %v2828
      %2894 = vst.msk [vmem:[%s196 + $0x9a0] sm:$0xff] %vm2849, %v2829
      %2895 = vst.msk [vmem:[%s196 + $0x9d8] sm:$0xff] %vm2849, %v2830
      %2896 = vst.msk [vmem:[%s196 + $0xa10] sm:$0xff] %vm2849, %v2831
      %2897 = vst.msk [vmem:[%s196 + $0xa48] sm:$0xff] %vm2849, %v2832
      %2898 = vst.msk [vmem:[%s196 + $0xa80] sm:$0xff] %vm2849, %v2833
      %2899 = vst.msk [vmem:[%s196 + $0xab8] sm:$0xff] %vm2849, %v2834
      %2900 = vst.msk [vmem:[%s196 + $0xaf0] sm:$0xff] %vm2849, %v2835
      %2901 = vst.msk [vmem:[%s196 + $0xb28] sm:$0xff] %vm2849, %v2836
      %2902 = vst.msk [vmem:[%s196 + $0xb60] sm:$0xff] %vm2849, %v2837
      %2903 = vst.msk [vmem:[%s196 + $0xb98] sm:$0xff] %vm2849, %v2838
      %2904 = vst.msk [vmem:[%s196 + $0xbd0] sm:$0xff] %vm2849, %v2839
      %2905 = vst.msk [vmem:[%s196 + $0xc08] sm:$0xff] %vm2849, %v2840
      %2906 = vst.msk [vmem:[%s196 + $0xc40] sm:$0xff] %vm2849, %v2841
      %2907 = vst.msk [vmem:[%s196 + $0xc78] sm:$0xff] %vm2849, %v2842
      %2908 = vst.msk [vmem:[%s196 + $0xcb0] sm:$0xff] %vm2849, %v2843
      %2909 = vst.msk [vmem:[%s196 + $0xce8] sm:$0xff] %vm2849, %v2844
      %2910 = vst.msk [vmem:[%s196 + $0xd20] sm:$0xff] %vm2849, %v2845
      %2911 = vst.msk [vmem:[%s196 + $0xd58] sm:$0xff] %vm2849, %v2846
      %2912 = vst.msk [vmem:[%s196 + $0xd90] sm:$0xff] %vm2849, %v2847
      %2913 = vst.msk [vmem:[%s196 + $0xdc8] sm:$0xff] %vm2849, %v2848
      %s2914 = smul.u32 64, %s14
      %p2915 = scmp.lt.s32.totalorder %s2914, 255
      %s2916 = scalar_select %p2915, %s2914, 255
      %s2917 = smul.addr %s2916, 7
      %s2918 = smul.addr %s2917, 8
      %s2919 = scalar_lea.vmem %s3, %s2918
      // Predicated region
      $region33: #{forward.1} parent=31 // pred_check
        %p2920 = pneg %p105
      $region34: #{forward.1} parent=31 // pred_check_branch
        %2922 = sbr.rel (%p2920) target = $region36
      $region35: #{forward.1} parent=31 // pred_region
        %s2923 = smul.u32 64, %s14
      $region36: #{forward.1} parent=31 // pred_fallthru
        _
    $region32: #{forward.1} parent=5 // pred_fallthru
      _
    %p2924 = scmp.le.s32.totalorder 2, %s9
    // Predicated region
    $region37: #{forward.1} parent=5 // pred_check
      %p2925 = pneg %p2924
    $region38: #{forward.1} parent=5 // pred_check_branch
      %2927 = sbr.rel (%p2925) target = $region40
    $region39: #{forward.1} parent=5 // pred_region
      %s2928 = ssub.s32 %s9, 2
      // Predicated region
      $region41: #{forward.1} parent=39 // pred_check
        %p2929 = pneg %p111
      $region42: #{forward.1} parent=39 // pred_check_branch
        %2931 = sbr.rel (%p2929) target = $region44
      $region43: #{forward.1} parent=39 // pred_region
        %s2932 = smul.u32 64, %s15
        %p2933 = scmp.lt.s32.totalorder %s2932, 255
        %s2934 = scalar_select %p2933, %s2932, 255
        %s2935 = smul.addr %s2934, 7
        %s2936 = smul.addr %s2935, 8
        %s2937 = scalar_lea.vmem %s3, %s2936
      $region44: #{forward.1} parent=39 // pred_fallthru
        _
    $region40: #{forward.1} parent=5 // pred_fallthru
      _
  $region6: #{forward.1} parent=0 // loop_footer
    %s13 = sadd.s32 1, %s9
  $region7: #{forward.1} parent=0 // loop_footer_branch
    %8 = sbr.rel target = $region3
  $region8: #{forward.1} parent=0 // loop_exit
    _

</llo_original>
